<compile_context>
chip_gen: v7x
topology: tpu7x:2x2x1
jax: 0.10.0
libtpu: 0.0.40
codegen_flags: <defaults>
</compile_context>

<pallas_src>
import jax
import jax.numpy as jnp
from jax.experimental import pallas as pl
from jax.experimental.pallas import tpu as pltpu

INPUT_DIM = 3
HIDDEN_DIM = 5
OUTPUT_DIM = 2
FC_OUT = OUTPUT_DIM * (OUTPUT_DIM + 3) // 2   # = 5  (mean(2) + log-var(2) + corr(1))


def hit_gaus_kernel(x_ref, w_ref, b_ref, fcw_ref, fcb_ref, means_ref, covs_ref):
    """Whole-sequence LSTM + FC + Gaussian parameterization, one invocation.

    x_ref     : (B, T*D)    full input sequence, batch-first, t-major per row
    w_ref     : (D+H, 4H)   fused pre-transposed [W_ih; W_hh], gate order i,f,o,g
    b_ref     : (1, 4H)     combined bias b_ih + b_hh, gate order i,f,o,g
    fcw_ref   : (H, FC_OUT) pre-transposed FC weight
    fcb_ref   : (1, FC_OUT) FC bias
    means_ref : (B, T, 2)   predicted means
    covs_ref  : (B, T, 4)   flattened 2x2 covariance rows [c00, c01, c10, c11]
    """
    D, H = INPUT_DIM, HIDDEN_DIM
    B = x_ref.shape[0]
    T = x_ref.shape[1] // D

    x_all = x_ref[...]            # single bulk load, stays resident in vregs/VMEM
    w_cat = w_ref[...]            # (D+H, 4H)
    bias = b_ref[...]             # (1, 4H)

    h = jnp.zeros((B, H), jnp.float32)
    c = jnp.zeros((B, H), jnp.float32)

    h_list = []
    # Statically unrolled time loop: one fused MXU dot + 2 activation calls per step.
    for t in range(T):
        x_t = x_all[:, t * D:(t + 1) * D]                  # (B, D) lane slice
        z = jnp.concatenate([x_t, h], axis=1)              # (B, D+H)
        gates = jnp.dot(z, w_cat,
                        preferred_element_type=jnp.float32) + bias   # (B, 4H)
        sg = jax.nn.sigmoid(gates[:, :3 * H])              # i, f, o (contiguous)
        g_g = jnp.tanh(gates[:, 3 * H:])                   # g (cell candidate)
        i_g = sg[:, 0:H]
        f_g = sg[:, H:2 * H]
        o_g = sg[:, 2 * H:3 * H]
        c = f_g * c + i_g * g_g
        h = o_g * jnp.tanh(c)
        h_list.append(h)

    fc_w = fcw_ref[...]                                    # (H, FC_OUT)
    fc_b = fcb_ref[...]                                    # (1, FC_OUT)

    # FC + Gaussian head per batch row (B is tiny & static); outputs are written
    # batch-first, one bulk store per batch row — no per-timestep stores.
    for b in range(B):
        hs_b = jnp.concatenate([ht[b:b + 1, :] for ht in h_list], axis=0)  # (T, H)
        out_b = jnp.dot(hs_b, fc_w,
                        preferred_element_type=jnp.float32) + fc_b         # (T, 5)
        mean_b = out_b[:, 0:2]                              # (T, 2)
        var_b = jnp.exp(out_b[:, 2:4])                      # (T, 2)  diag of cov
        corr_b = jnp.tanh(out_b[:, 4:5])                    # (T, 1)
        off_b = jnp.sqrt(var_b[:, 0:1] * var_b[:, 1:2]) * corr_b            # (T, 1)
        covs_b = jnp.concatenate(
            [var_b[:, 0:1], off_b, off_b, var_b[:, 1:2]], axis=1)           # (T, 4)
        means_ref[b] = mean_b
        covs_ref[b] = covs_b


def _reorder_gates(w):
    """Permute PyTorch LSTM gate blocks [i, f, g, o] -> [i, f, o, g] along axis 0."""
    i, f, g, o = jnp.split(w, 4, axis=0)
    return jnp.concatenate([i, f, o, g], axis=0)


@jax.jit
def hit_gaus_forward(x, params):
    """x: (B, T, 3) float32, batch-first. Returns (means (B,T,2), covs (B,T,2,2))."""
    B, T, D = x.shape
    H = HIDDEN_DIM

    # One-time weight prep (trace time): fuse, permute gates, pre-transpose.
    w_ih = _reorder_gates(params["w_ih"])                          # (4H, D)
    w_hh = _reorder_gates(params["w_hh"])                          # (4H, H)
    bias = _reorder_gates(
        (params["b_ih"] + params["b_hh"])[:, None]).reshape(1, 4 * H)
    w_cat = jnp.concatenate([w_ih.T, w_hh.T], axis=0)              # (D+H, 4H)
    fc_w = params["fc_w"].T                                        # (H, FC_OUT)
    fc_b = params["fc_b"].reshape(1, FC_OUT)

    x2d = x.astype(jnp.float32).reshape(B, T * D)                  # contiguous, free

    vmem = pl.BlockSpec(memory_space=pltpu.MemorySpace.VMEM)
    means, covs_flat = pl.pallas_call(
        hit_gaus_kernel,
        out_shape=(jax.ShapeDtypeStruct((B, T, 2), jnp.float32),
                   jax.ShapeDtypeStruct((B, T, 4), jnp.float32)),
        in_specs=[vmem, vmem, vmem, vmem, vmem],
        out_specs=(vmem, vmem),
    )(x2d, w_cat, bias, fc_w, fc_b)

    return means, covs_flat.reshape(B, T, 2, 2)


def init_params(key):
    """Deterministic init mirroring PyTorch default LSTM/Linear init shapes."""
    H, D = HIDDEN_DIM, INPUT_DIM
    k = 1.0 / jnp.sqrt(H)
    ks = jax.random.split(key, 6)
    return {
        "w_ih": jax.random.uniform(ks[0], (4 * H, D), jnp.float32, -k, k),
        "w_hh": jax.random.uniform(ks[1], (4 * H, H), jnp.float32, -k, k),
        "b_ih": jax.random.uniform(ks[2], (4 * H,), jnp.float32, -k, k),
        "b_hh": jax.random.uniform(ks[3], (4 * H,), jnp.float32, -k, k),
        "fc_w": jax.random.uniform(ks[4], (FC_OUT, H), jnp.float32, -k, k),
        "fc_b": jax.random.uniform(ks[5], (FC_OUT,), jnp.float32, -k, k),
    }


def reference_forward(x, params):
    """Pure-JAX reference of HitGausPredictor.forward (PyTorch gate order i,f,g,o)."""
    B, T, _ = x.shape
    H = HIDDEN_DIM
    w_ih, w_hh = params["w_ih"], params["w_hh"]
    b = params["b_ih"] + params["b_hh"]
    h = jnp.zeros((B, H), jnp.float32)
    c = jnp.zeros((B, H), jnp.float32)
    hs = []
    for t in range(T):
        gates = x[:, t, :] @ w_ih.T + h @ w_hh.T + b
        i = jax.nn.sigmoid(gates[:, 0 * H:1 * H])
        f = jax.nn.sigmoid(gates[:, 1 * H:2 * H])
        g = jnp.tanh(gates[:, 2 * H:3 * H])
        o = jax.nn.sigmoid(gates[:, 3 * H:4 * H])
        c = f * c + i * g
        h = o * jnp.tanh(c)
        hs.append(h)
    hs = jnp.stack(hs, axis=1).reshape(B * T, H)
    out = hs @ params["fc_w"].T + params["fc_b"]
    means = out[:, :2]
    var = jnp.exp(out[:, 2:4])
    corr = jnp.tanh(out[:, 4])
    covs = jnp.sqrt(var[:, :, None] * var[:, None, :])
    covs = covs.at[:, 0, 1].multiply(corr)
    covs = covs.at[:, 1, 0].multiply(corr)
    return means.reshape(B, T, 2), covs.reshape(B, T, 2, 2)


if __name__ == "__main__":
    key = jax.random.PRNGKey(0)
    k_x, k_p = jax.random.split(key)

    B, T = 2, 8                                     # batch=2, seq=8
    x = jax.random.normal(k_x, (B, T, INPUT_DIM), jnp.float32)
    params = init_params(k_p)

    means, covs = hit_gaus_forward(x, params)
    means, covs = jax.block_until_ready((means, covs))

    ref_means, ref_covs = reference_forward(x, params)
    assert means.shape == (B, T, 2)
    assert covs.shape == (B, T, 2, 2)
    assert jnp.allclose(means, ref_means, atol=1e-4, rtol=1e-4), "means mismatch"
    assert jnp.allclose(covs, ref_covs, atol=1e-4, rtol=1e-4), "covs mismatch"

    print("KERNEL_OK")
</pallas_src>

<mosaic_0001>
module attributes {stable_mosaic.version = 11 : i64} {
  func.func @hit_gaus_kernel(%arg0: memref<2x24xf32, #tpu.memory_space<vmem>>, %arg1: memref<8x20xf32, #tpu.memory_space<vmem>>, %arg2: memref<1x20xf32, #tpu.memory_space<vmem>>, %arg3: memref<5x5xf32, #tpu.memory_space<vmem>>, %arg4: memref<1x5xf32, #tpu.memory_space<vmem>>, %arg5: memref<2x8x2xf32, #tpu.memory_space<vmem>>, %arg6: memref<2x8x4xf32, #tpu.memory_space<vmem>>) attributes {dimension_semantics = [], scalar_prefetch = 0 : i64, scratch_operands = 0 : i64, tpu.core_type = #tpu.core_type<tc>} {
    %c0 = arith.constant 0 : index
    %c0_0 = arith.constant 0 : index
    %0 = vector.load %arg0[%c0, %c0_0] : memref<2x24xf32, #tpu.memory_space<vmem>>, vector<2x24xf32>
    %c0_1 = arith.constant 0 : index
    %c0_2 = arith.constant 0 : index
    %1 = vector.load %arg1[%c0_1, %c0_2] : memref<8x20xf32, #tpu.memory_space<vmem>>, vector<8x20xf32>
    %c0_3 = arith.constant 0 : index
    %c0_4 = arith.constant 0 : index
    %2 = vector.load %arg2[%c0_3, %c0_4] : memref<1x20xf32, #tpu.memory_space<vmem>>, vector<1x20xf32>
    %cst = arith.constant 0.000000e+00 : f32
    %3 = vector.broadcast %cst : f32 to vector<2x5xf32>
    %cst_5 = arith.constant 0.000000e+00 : f32
    %4 = vector.broadcast %cst_5 : f32 to vector<2x5xf32>
    %5 = vector.extract_strided_slice %0 {offsets = [0, 0], sizes = [2, 3], strides = [1, 1]} : vector<2x24xf32> to vector<2x3xf32>
    %6 = tpu.concatenate %5, %3 in 1 : vector<2x3xf32>, vector<2x5xf32> -> vector<2x8xf32>
    %cst_6 = arith.constant dense<0.000000e+00> : vector<2x20xf32>
    %7 = tpu.matmul %6, %1, %cst_6 {dimension_numbers = #tpu.dot_dimension_numbers<[1], [0], [0], [1], [0, 0, 1, 1], [], []>} : vector<2x8xf32>, vector<8x20xf32>, vector<2x20xf32> -> vector<2x20xf32>
    %8 = vector.broadcast %2 : vector<1x20xf32> to vector<2x20xf32>
    %9 = arith.addf %7, %8 : vector<2x20xf32>
    %10 = vector.extract_strided_slice %9 {offsets = [0, 0], sizes = [2, 15], strides = [1, 1]} : vector<2x20xf32> to vector<2x15xf32>
    %11 = arith.negf %10 : vector<2x15xf32>
    %12 = math.exp %11 : vector<2x15xf32>
    %cst_7 = arith.constant 1.000000e+00 : f32
    %13 = vector.broadcast %cst_7 : f32 to vector<2x15xf32>
    %14 = arith.addf %13, %12 : vector<2x15xf32>
    %15 = arith.divf %13, %14 : vector<2x15xf32>
    %16 = vector.extract_strided_slice %9 {offsets = [0, 15], sizes = [2, 5], strides = [1, 1]} : vector<2x20xf32> to vector<2x5xf32>
    %17 = math.tanh %16 : vector<2x5xf32>
    %18 = vector.extract_strided_slice %15 {offsets = [0, 0], sizes = [2, 5], strides = [1, 1]} : vector<2x15xf32> to vector<2x5xf32>
    %19 = vector.extract_strided_slice %15 {offsets = [0, 5], sizes = [2, 5], strides = [1, 1]} : vector<2x15xf32> to vector<2x5xf32>
    %20 = vector.extract_strided_slice %15 {offsets = [0, 10], sizes = [2, 5], strides = [1, 1]} : vector<2x15xf32> to vector<2x5xf32>
    %21 = arith.mulf %19, %4 : vector<2x5xf32>
    %22 = arith.mulf %18, %17 : vector<2x5xf32>
    %23 = arith.addf %21, %22 : vector<2x5xf32>
    %24 = math.tanh %23 : vector<2x5xf32>
    %25 = arith.mulf %20, %24 : vector<2x5xf32>
    %26 = vector.extract_strided_slice %0 {offsets = [0, 3], sizes = [2, 3], strides = [1, 1]} : vector<2x24xf32> to vector<2x3xf32>
    %27 = tpu.concatenate %26, %25 in 1 : vector<2x3xf32>, vector<2x5xf32> -> vector<2x8xf32>
    %cst_8 = arith.constant dense<0.000000e+00> : vector<2x20xf32>
    %28 = tpu.matmul %27, %1, %cst_8 {dimension_numbers = #tpu.dot_dimension_numbers<[1], [0], [0], [1], [0, 0, 1, 1], [], []>} : vector<2x8xf32>, vector<8x20xf32>, vector<2x20xf32> -> vector<2x20xf32>
    %29 = vector.broadcast %2 : vector<1x20xf32> to vector<2x20xf32>
    %30 = arith.addf %28, %29 : vector<2x20xf32>
    %31 = vector.extract_strided_slice %30 {offsets = [0, 0], sizes = [2, 15], strides = [1, 1]} : vector<2x20xf32> to vector<2x15xf32>
    %32 = arith.negf %31 : vector<2x15xf32>
    %33 = math.exp %32 : vector<2x15xf32>
    %cst_9 = arith.constant 1.000000e+00 : f32
    %34 = vector.broadcast %cst_9 : f32 to vector<2x15xf32>
    %35 = arith.addf %34, %33 : vector<2x15xf32>
    %36 = arith.divf %34, %35 : vector<2x15xf32>
    %37 = vector.extract_strided_slice %30 {offsets = [0, 15], sizes = [2, 5], strides = [1, 1]} : vector<2x20xf32> to vector<2x5xf32>
    %38 = math.tanh %37 : vector<2x5xf32>
    %39 = vector.extract_strided_slice %36 {offsets = [0, 0], sizes = [2, 5], strides = [1, 1]} : vector<2x15xf32> to vector<2x5xf32>
    %40 = vector.extract_strided_slice %36 {offsets = [0, 5], sizes = [2, 5], strides = [1, 1]} : vector<2x15xf32> to vector<2x5xf32>
    %41 = vector.extract_strided_slice %36 {offsets = [0, 10], sizes = [2, 5], strides = [1, 1]} : vector<2x15xf32> to vector<2x5xf32>
    %42 = arith.mulf %40, %23 : vector<2x5xf32>
    %43 = arith.mulf %39, %38 : vector<2x5xf32>
    %44 = arith.addf %42, %43 : vector<2x5xf32>
    %45 = math.tanh %44 : vector<2x5xf32>
    %46 = arith.mulf %41, %45 : vector<2x5xf32>
    %47 = vector.extract_strided_slice %0 {offsets = [0, 6], sizes = [2, 3], strides = [1, 1]} : vector<2x24xf32> to vector<2x3xf32>
    %48 = tpu.concatenate %47, %46 in 1 : vector<2x3xf32>, vector<2x5xf32> -> vector<2x8xf32>
    %cst_10 = arith.constant dense<0.000000e+00> : vector<2x20xf32>
    %49 = tpu.matmul %48, %1, %cst_10 {dimension_numbers = #tpu.dot_dimension_numbers<[1], [0], [0], [1], [0, 0, 1, 1], [], []>} : vector<2x8xf32>, vector<8x20xf32>, vector<2x20xf32> -> vector<2x20xf32>
    %50 = vector.broadcast %2 : vector<1x20xf32> to vector<2x20xf32>
    %51 = arith.addf %49, %50 : vector<2x20xf32>
    %52 = vector.extract_strided_slice %51 {offsets = [0, 0], sizes = [2, 15], strides = [1, 1]} : vector<2x20xf32> to vector<2x15xf32>
    %53 = arith.negf %52 : vector<2x15xf32>
    %54 = math.exp %53 : vector<2x15xf32>
    %cst_11 = arith.constant 1.000000e+00 : f32
    %55 = vector.broadcast %cst_11 : f32 to vector<2x15xf32>
    %56 = arith.addf %55, %54 : vector<2x15xf32>
    %57 = arith.divf %55, %56 : vector<2x15xf32>
    %58 = vector.extract_strided_slice %51 {offsets = [0, 15], sizes = [2, 5], strides = [1, 1]} : vector<2x20xf32> to vector<2x5xf32>
    %59 = math.tanh %58 : vector<2x5xf32>
    %60 = vector.extract_strided_slice %57 {offsets = [0, 0], sizes = [2, 5], strides = [1, 1]} : vector<2x15xf32> to vector<2x5xf32>
    %61 = vector.extract_strided_slice %57 {offsets = [0, 5], sizes = [2, 5], strides = [1, 1]} : vector<2x15xf32> to vector<2x5xf32>
    %62 = vector.extract_strided_slice %57 {offsets = [0, 10], sizes = [2, 5], strides = [1, 1]} : vector<2x15xf32> to vector<2x5xf32>
    %63 = arith.mulf %61, %44 : vector<2x5xf32>
    %64 = arith.mulf %60, %59 : vector<2x5xf32>
    %65 = arith.addf %63, %64 : vector<2x5xf32>
    %66 = math.tanh %65 : vector<2x5xf32>
    %67 = arith.mulf %62, %66 : vector<2x5xf32>
    %68 = vector.extract_strided_slice %0 {offsets = [0, 9], sizes = [2, 3], strides = [1, 1]} : vector<2x24xf32> to vector<2x3xf32>
    %69 = tpu.concatenate %68, %67 in 1 : vector<2x3xf32>, vector<2x5xf32> -> vector<2x8xf32>
    %cst_12 = arith.constant dense<0.000000e+00> : vector<2x20xf32>
    %70 = tpu.matmul %69, %1, %cst_12 {dimension_numbers = #tpu.dot_dimension_numbers<[1], [0], [0], [1], [0, 0, 1, 1], [], []>} : vector<2x8xf32>, vector<8x20xf32>, vector<2x20xf32> -> vector<2x20xf32>
    %71 = vector.broadcast %2 : vector<1x20xf32> to vector<2x20xf32>
    %72 = arith.addf %70, %71 : vector<2x20xf32>
    %73 = vector.extract_strided_slice %72 {offsets = [0, 0], sizes = [2, 15], strides = [1, 1]} : vector<2x20xf32> to vector<2x15xf32>
    %74 = arith.negf %73 : vector<2x15xf32>
    %75 = math.exp %74 : vector<2x15xf32>
    %cst_13 = arith.constant 1.000000e+00 : f32
    %76 = vector.broadcast %cst_13 : f32 to vector<2x15xf32>
    %77 = arith.addf %76, %75 : vector<2x15xf32>
    %78 = arith.divf %76, %77 : vector<2x15xf32>
    %79 = vector.extract_strided_slice %72 {offsets = [0, 15], sizes = [2, 5], strides = [1, 1]} : vector<2x20xf32> to vector<2x5xf32>
    %80 = math.tanh %79 : vector<2x5xf32>
    %81 = vector.extract_strided_slice %78 {offsets = [0, 0], sizes = [2, 5], strides = [1, 1]} : vector<2x15xf32> to vector<2x5xf32>
    %82 = vector.extract_strided_slice %78 {offsets = [0, 5], sizes = [2, 5], strides = [1, 1]} : vector<2x15xf32> to vector<2x5xf32>
    %83 = vector.extract_strided_slice %78 {offsets = [0, 10], sizes = [2, 5], strides = [1, 1]} : vector<2x15xf32> to vector<2x5xf32>
    %84 = arith.mulf %82, %65 : vector<2x5xf32>
    %85 = arith.mulf %81, %80 : vector<2x5xf32>
    %86 = arith.addf %84, %85 : vector<2x5xf32>
    %87 = math.tanh %86 : vector<2x5xf32>
    %88 = arith.mulf %83, %87 : vector<2x5xf32>
    %89 = vector.extract_strided_slice %0 {offsets = [0, 12], sizes = [2, 3], strides = [1, 1]} : vector<2x24xf32> to vector<2x3xf32>
    %90 = tpu.concatenate %89, %88 in 1 : vector<2x3xf32>, vector<2x5xf32> -> vector<2x8xf32>
    %cst_14 = arith.constant dense<0.000000e+00> : vector<2x20xf32>
    %91 = tpu.matmul %90, %1, %cst_14 {dimension_numbers = #tpu.dot_dimension_numbers<[1], [0], [0], [1], [0, 0, 1, 1], [], []>} : vector<2x8xf32>, vector<8x20xf32>, vector<2x20xf32> -> vector<2x20xf32>
    %92 = vector.broadcast %2 : vector<1x20xf32> to vector<2x20xf32>
    %93 = arith.addf %91, %92 : vector<2x20xf32>
    %94 = vector.extract_strided_slice %93 {offsets = [0, 0], sizes = [2, 15], strides = [1, 1]} : vector<2x20xf32> to vector<2x15xf32>
    %95 = arith.negf %94 : vector<2x15xf32>
    %96 = math.exp %95 : vector<2x15xf32>
    %cst_15 = arith.constant 1.000000e+00 : f32
    %97 = vector.broadcast %cst_15 : f32 to vector<2x15xf32>
    %98 = arith.addf %97, %96 : vector<2x15xf32>
    %99 = arith.divf %97, %98 : vector<2x15xf32>
    %100 = vector.extract_strided_slice %93 {offsets = [0, 15], sizes = [2, 5], strides = [1, 1]} : vector<2x20xf32> to vector<2x5xf32>
    %101 = math.tanh %100 : vector<2x5xf32>
    %102 = vector.extract_strided_slice %99 {offsets = [0, 0], sizes = [2, 5], strides = [1, 1]} : vector<2x15xf32> to vector<2x5xf32>
    %103 = vector.extract_strided_slice %99 {offsets = [0, 5], sizes = [2, 5], strides = [1, 1]} : vector<2x15xf32> to vector<2x5xf32>
    %104 = vector.extract_strided_slice %99 {offsets = [0, 10], sizes = [2, 5], strides = [1, 1]} : vector<2x15xf32> to vector<2x5xf32>
    %105 = arith.mulf %103, %86 : vector<2x5xf32>
    %106 = arith.mulf %102, %101 : vector<2x5xf32>
    %107 = arith.addf %105, %106 : vector<2x5xf32>
    %108 = math.tanh %107 : vector<2x5xf32>
    %109 = arith.mulf %104, %108 : vector<2x5xf32>
    %110 = vector.extract_strided_slice %0 {offsets = [0, 15], sizes = [2, 3], strides = [1, 1]} : vector<2x24xf32> to vector<2x3xf32>
    %111 = tpu.concatenate %110, %109 in 1 : vector<2x3xf32>, vector<2x5xf32> -> vector<2x8xf32>
    %cst_16 = arith.constant dense<0.000000e+00> : vector<2x20xf32>
    %112 = tpu.matmul %111, %1, %cst_16 {dimension_numbers = #tpu.dot_dimension_numbers<[1], [0], [0], [1], [0, 0, 1, 1], [], []>} : vector<2x8xf32>, vector<8x20xf32>, vector<2x20xf32> -> vector<2x20xf32>
    %113 = vector.broadcast %2 : vector<1x20xf32> to vector<2x20xf32>
    %114 = arith.addf %112, %113 : vector<2x20xf32>
    %115 = vector.extract_strided_slice %114 {offsets = [0, 0], sizes = [2, 15], strides = [1, 1]} : vector<2x20xf32> to vector<2x15xf32>
    %116 = arith.negf %115 : vector<2x15xf32>
    %117 = math.exp %116 : vector<2x15xf32>
    %cst_17 = arith.constant 1.000000e+00 : f32
    %118 = vector.broadcast %cst_17 : f32 to vector<2x15xf32>
    %119 = arith.addf %118, %117 : vector<2x15xf32>
    %120 = arith.divf %118, %119 : vector<2x15xf32>
    %121 = vector.extract_strided_slice %114 {offsets = [0, 15], sizes = [2, 5], strides = [1, 1]} : vector<2x20xf32> to vector<2x5xf32>
    %122 = math.tanh %121 : vector<2x5xf32>
    %123 = vector.extract_strided_slice %120 {offsets = [0, 0], sizes = [2, 5], strides = [1, 1]} : vector<2x15xf32> to vector<2x5xf32>
    %124 = vector.extract_strided_slice %120 {offsets = [0, 5], sizes = [2, 5], strides = [1, 1]} : vector<2x15xf32> to vector<2x5xf32>
    %125 = vector.extract_strided_slice %120 {offsets = [0, 10], sizes = [2, 5], strides = [1, 1]} : vector<2x15xf32> to vector<2x5xf32>
    %126 = arith.mulf %124, %107 : vector<2x5xf32>
    %127 = arith.mulf %123, %122 : vector<2x5xf32>
    %128 = arith.addf %126, %127 : vector<2x5xf32>
    %129 = math.tanh %128 : vector<2x5xf32>
    %130 = arith.mulf %125, %129 : vector<2x5xf32>
    %131 = vector.extract_strided_slice %0 {offsets = [0, 18], sizes = [2, 3], strides = [1, 1]} : vector<2x24xf32> to vector<2x3xf32>
    %132 = tpu.concatenate %131, %130 in 1 : vector<2x3xf32>, vector<2x5xf32> -> vector<2x8xf32>
    %cst_18 = arith.constant dense<0.000000e+00> : vector<2x20xf32>
    %133 = tpu.matmul %132, %1, %cst_18 {dimension_numbers = #tpu.dot_dimension_numbers<[1], [0], [0], [1], [0, 0, 1, 1], [], []>} : vector<2x8xf32>, vector<8x20xf32>, vector<2x20xf32> -> vector<2x20xf32>
    %134 = vector.broadcast %2 : vector<1x20xf32> to vector<2x20xf32>
    %135 = arith.addf %133, %134 : vector<2x20xf32>
    %136 = vector.extract_strided_slice %135 {offsets = [0, 0], sizes = [2, 15], strides = [1, 1]} : vector<2x20xf32> to vector<2x15xf32>
    %137 = arith.negf %136 : vector<2x15xf32>
    %138 = math.exp %137 : vector<2x15xf32>
    %cst_19 = arith.constant 1.000000e+00 : f32
    %139 = vector.broadcast %cst_19 : f32 to vector<2x15xf32>
    %140 = arith.addf %139, %138 : vector<2x15xf32>
    %141 = arith.divf %139, %140 : vector<2x15xf32>
    %142 = vector.extract_strided_slice %135 {offsets = [0, 15], sizes = [2, 5], strides = [1, 1]} : vector<2x20xf32> to vector<2x5xf32>
    %143 = math.tanh %142 : vector<2x5xf32>
    %144 = vector.extract_strided_slice %141 {offsets = [0, 0], sizes = [2, 5], strides = [1, 1]} : vector<2x15xf32> to vector<2x5xf32>
    %145 = vector.extract_strided_slice %141 {offsets = [0, 5], sizes = [2, 5], strides = [1, 1]} : vector<2x15xf32> to vector<2x5xf32>
    %146 = vector.extract_strided_slice %141 {offsets = [0, 10], sizes = [2, 5], strides = [1, 1]} : vector<2x15xf32> to vector<2x5xf32>
    %147 = arith.mulf %145, %128 : vector<2x5xf32>
    %148 = arith.mulf %144, %143 : vector<2x5xf32>
    %149 = arith.addf %147, %148 : vector<2x5xf32>
    %150 = math.tanh %149 : vector<2x5xf32>
    %151 = arith.mulf %146, %150 : vector<2x5xf32>
    %152 = vector.extract_strided_slice %0 {offsets = [0, 21], sizes = [2, 3], strides = [1, 1]} : vector<2x24xf32> to vector<2x3xf32>
    %153 = tpu.concatenate %152, %151 in 1 : vector<2x3xf32>, vector<2x5xf32> -> vector<2x8xf32>
    %cst_20 = arith.constant dense<0.000000e+00> : vector<2x20xf32>
    %154 = tpu.matmul %153, %1, %cst_20 {dimension_numbers = #tpu.dot_dimension_numbers<[1], [0], [0], [1], [0, 0, 1, 1], [], []>} : vector<2x8xf32>, vector<8x20xf32>, vector<2x20xf32> -> vector<2x20xf32>
    %155 = vector.broadcast %2 : vector<1x20xf32> to vector<2x20xf32>
    %156 = arith.addf %154, %155 : vector<2x20xf32>
    %157 = vector.extract_strided_slice %156 {offsets = [0, 0], sizes = [2, 15], strides = [1, 1]} : vector<2x20xf32> to vector<2x15xf32>
    %158 = arith.negf %157 : vector<2x15xf32>
    %159 = math.exp %158 : vector<2x15xf32>
    %cst_21 = arith.constant 1.000000e+00 : f32
    %160 = vector.broadcast %cst_21 : f32 to vector<2x15xf32>
    %161 = arith.addf %160, %159 : vector<2x15xf32>
    %162 = arith.divf %160, %161 : vector<2x15xf32>
    %163 = vector.extract_strided_slice %156 {offsets = [0, 15], sizes = [2, 5], strides = [1, 1]} : vector<2x20xf32> to vector<2x5xf32>
    %164 = math.tanh %163 : vector<2x5xf32>
    %165 = vector.extract_strided_slice %162 {offsets = [0, 0], sizes = [2, 5], strides = [1, 1]} : vector<2x15xf32> to vector<2x5xf32>
    %166 = vector.extract_strided_slice %162 {offsets = [0, 5], sizes = [2, 5], strides = [1, 1]} : vector<2x15xf32> to vector<2x5xf32>
    %167 = vector.extract_strided_slice %162 {offsets = [0, 10], sizes = [2, 5], strides = [1, 1]} : vector<2x15xf32> to vector<2x5xf32>
    %168 = arith.mulf %166, %149 : vector<2x5xf32>
    %169 = arith.mulf %165, %164 : vector<2x5xf32>
    %170 = arith.addf %168, %169 : vector<2x5xf32>
    %171 = math.tanh %170 : vector<2x5xf32>
    %172 = arith.mulf %167, %171 : vector<2x5xf32>
    %c0_22 = arith.constant 0 : index
    %c0_23 = arith.constant 0 : index
    %173 = vector.load %arg3[%c0_22, %c0_23] : memref<5x5xf32, #tpu.memory_space<vmem>>, vector<5x5xf32>
    %c0_24 = arith.constant 0 : index
    %c0_25 = arith.constant 0 : index
    %174 = vector.load %arg4[%c0_24, %c0_25] : memref<1x5xf32, #tpu.memory_space<vmem>>, vector<1x5xf32>
    %175 = vector.extract_strided_slice %25 {offsets = [0, 0], sizes = [1, 5], strides = [1, 1]} : vector<2x5xf32> to vector<1x5xf32>
    %176 = vector.extract_strided_slice %46 {offsets = [0, 0], sizes = [1, 5], strides = [1, 1]} : vector<2x5xf32> to vector<1x5xf32>
    %177 = vector.extract_strided_slice %67 {offsets = [0, 0], sizes = [1, 5], strides = [1, 1]} : vector<2x5xf32> to vector<1x5xf32>
    %178 = vector.extract_strided_slice %88 {offsets = [0, 0], sizes = [1, 5], strides = [1, 1]} : vector<2x5xf32> to vector<1x5xf32>
    %179 = vector.extract_strided_slice %109 {offsets = [0, 0], sizes = [1, 5], strides = [1, 1]} : vector<2x5xf32> to vector<1x5xf32>
    %180 = vector.extract_strided_slice %130 {offsets = [0, 0], sizes = [1, 5], strides = [1, 1]} : vector<2x5xf32> to vector<1x5xf32>
    %181 = vector.extract_strided_slice %151 {offsets = [0, 0], sizes = [1, 5], strides = [1, 1]} : vector<2x5xf32> to vector<1x5xf32>
    %182 = vector.extract_strided_slice %172 {offsets = [0, 0], sizes = [1, 5], strides = [1, 1]} : vector<2x5xf32> to vector<1x5xf32>
    %183 = tpu.concatenate %175, %176, %177, %178, %179, %180, %181, %182 in 0 : vector<1x5xf32>, vector<1x5xf32>, vector<1x5xf32>, vector<1x5xf32>, vector<1x5xf32>, vector<1x5xf32>, vector<1x5xf32>, vector<1x5xf32> -> vector<8x5xf32>
    %cst_26 = arith.constant dense<0.000000e+00> : vector<8x5xf32>
    %184 = tpu.matmul %183, %173, %cst_26 {dimension_numbers = #tpu.dot_dimension_numbers<[1], [0], [0], [1], [0, 0, 1, 1], [], []>} : vector<8x5xf32>, vector<5x5xf32>, vector<8x5xf32> -> vector<8x5xf32>
    %185 = vector.broadcast %174 : vector<1x5xf32> to vector<8x5xf32>
    %186 = arith.addf %184, %185 : vector<8x5xf32>
    %187 = vector.extract_strided_slice %186 {offsets = [0, 0], sizes = [8, 2], strides = [1, 1]} : vector<8x5xf32> to vector<8x2xf32>
    %188 = vector.extract_strided_slice %186 {offsets = [0, 2], sizes = [8, 2], strides = [1, 1]} : vector<8x5xf32> to vector<8x2xf32>
    %189 = math.exp %188 : vector<8x2xf32>
    %190 = vector.extract_strided_slice %186 {offsets = [0, 4], sizes = [8, 1], strides = [1, 1]} : vector<8x5xf32> to vector<8x1xf32>
    %191 = math.tanh %190 : vector<8x1xf32>
    %192 = vector.extract_strided_slice %189 {offsets = [0, 0], sizes = [8, 1], strides = [1, 1]} : vector<8x2xf32> to vector<8x1xf32>
    %193 = vector.extract_strided_slice %189 {offsets = [0, 1], sizes = [8, 1], strides = [1, 1]} : vector<8x2xf32> to vector<8x1xf32>
    %194 = arith.mulf %192, %193 : vector<8x1xf32>
    %195 = math.sqrt %194 : vector<8x1xf32>
    %196 = arith.mulf %195, %191 : vector<8x1xf32>
    %197 = vector.extract_strided_slice %189 {offsets = [0, 0], sizes = [8, 1], strides = [1, 1]} : vector<8x2xf32> to vector<8x1xf32>
    %198 = vector.extract_strided_slice %189 {offsets = [0, 1], sizes = [8, 1], strides = [1, 1]} : vector<8x2xf32> to vector<8x1xf32>
    %199 = tpu.concatenate %197, %196, %196, %198 in 1 : vector<8x1xf32>, vector<8x1xf32>, vector<8x1xf32>, vector<8x1xf32> -> vector<8x4xf32>
    %c0_27 = arith.constant 0 : index
    %c0_28 = arith.constant 0 : index
    %c0_29 = arith.constant 0 : index
    %200 = vector.load %arg5[%c0_27, %c0_28, %c0_29] : memref<2x8x2xf32, #tpu.memory_space<vmem>>, vector<1x8x2xf32>
    %201 = vector.shape_cast %200 : vector<1x8x2xf32> to vector<8x2xf32>
    %202 = vector.shape_cast %187 : vector<8x2xf32> to vector<1x8x2xf32>
    tpu.vector_store %arg5[%c0_27, %c0_28, %c0_29], %202 {strides = array<i32>} : memref<2x8x2xf32, #tpu.memory_space<vmem>>, vector<1x8x2xf32>,
    %c0_30 = arith.constant 0 : index
    %c0_31 = arith.constant 0 : index
    %c0_32 = arith.constant 0 : index
    %203 = vector.load %arg6[%c0_30, %c0_31, %c0_32] : memref<2x8x4xf32, #tpu.memory_space<vmem>>, vector<1x8x4xf32>
    %204 = vector.shape_cast %203 : vector<1x8x4xf32> to vector<8x4xf32>
    %205 = vector.shape_cast %199 : vector<8x4xf32> to vector<1x8x4xf32>
    tpu.vector_store %arg6[%c0_30, %c0_31, %c0_32], %205 {strides = array<i32>} : memref<2x8x4xf32, #tpu.memory_space<vmem>>, vector<1x8x4xf32>,
    %206 = vector.extract_strided_slice %25 {offsets = [1, 0], sizes = [1, 5], strides = [1, 1]} : vector<2x5xf32> to vector<1x5xf32>
    %207 = vector.extract_strided_slice %46 {offsets = [1, 0], sizes = [1, 5], strides = [1, 1]} : vector<2x5xf32> to vector<1x5xf32>
    %208 = vector.extract_strided_slice %67 {offsets = [1, 0], sizes = [1, 5], strides = [1, 1]} : vector<2x5xf32> to vector<1x5xf32>
    %209 = vector.extract_strided_slice %88 {offsets = [1, 0], sizes = [1, 5], strides = [1, 1]} : vector<2x5xf32> to vector<1x5xf32>
    %210 = vector.extract_strided_slice %109 {offsets = [1, 0], sizes = [1, 5], strides = [1, 1]} : vector<2x5xf32> to vector<1x5xf32>
    %211 = vector.extract_strided_slice %130 {offsets = [1, 0], sizes = [1, 5], strides = [1, 1]} : vector<2x5xf32> to vector<1x5xf32>
    %212 = vector.extract_strided_slice %151 {offsets = [1, 0], sizes = [1, 5], strides = [1, 1]} : vector<2x5xf32> to vector<1x5xf32>
    %213 = vector.extract_strided_slice %172 {offsets = [1, 0], sizes = [1, 5], strides = [1, 1]} : vector<2x5xf32> to vector<1x5xf32>
    %214 = tpu.concatenate %206, %207, %208, %209, %210, %211, %212, %213 in 0 : vector<1x5xf32>, vector<1x5xf32>, vector<1x5xf32>, vector<1x5xf32>, vector<1x5xf32>, vector<1x5xf32>, vector<1x5xf32>, vector<1x5xf32> -> vector<8x5xf32>
    %cst_33 = arith.constant dense<0.000000e+00> : vector<8x5xf32>
    %215 = tpu.matmul %214, %173, %cst_33 {dimension_numbers = #tpu.dot_dimension_numbers<[1], [0], [0], [1], [0, 0, 1, 1], [], []>} : vector<8x5xf32>, vector<5x5xf32>, vector<8x5xf32> -> vector<8x5xf32>
    %216 = vector.broadcast %174 : vector<1x5xf32> to vector<8x5xf32>
    %217 = arith.addf %215, %216 : vector<8x5xf32>
    %218 = vector.extract_strided_slice %217 {offsets = [0, 0], sizes = [8, 2], strides = [1, 1]} : vector<8x5xf32> to vector<8x2xf32>
    %219 = vector.extract_strided_slice %217 {offsets = [0, 2], sizes = [8, 2], strides = [1, 1]} : vector<8x5xf32> to vector<8x2xf32>
    %220 = math.exp %219 : vector<8x2xf32>
    %221 = vector.extract_strided_slice %217 {offsets = [0, 4], sizes = [8, 1], strides = [1, 1]} : vector<8x5xf32> to vector<8x1xf32>
    %222 = math.tanh %221 : vector<8x1xf32>
    %223 = vector.extract_strided_slice %220 {offsets = [0, 0], sizes = [8, 1], strides = [1, 1]} : vector<8x2xf32> to vector<8x1xf32>
    %224 = vector.extract_strided_slice %220 {offsets = [0, 1], sizes = [8, 1], strides = [1, 1]} : vector<8x2xf32> to vector<8x1xf32>
    %225 = arith.mulf %223, %224 : vector<8x1xf32>
    %226 = math.sqrt %225 : vector<8x1xf32>
    %227 = arith.mulf %226, %222 : vector<8x1xf32>
    %228 = vector.extract_strided_slice %220 {offsets = [0, 0], sizes = [8, 1], strides = [1, 1]} : vector<8x2xf32> to vector<8x1xf32>
    %229 = vector.extract_strided_slice %220 {offsets = [0, 1], sizes = [8, 1], strides = [1, 1]} : vector<8x2xf32> to vector<8x1xf32>
    %230 = tpu.concatenate %228, %227, %227, %229 in 1 : vector<8x1xf32>, vector<8x1xf32>, vector<8x1xf32>, vector<8x1xf32> -> vector<8x4xf32>
    %c1 = arith.constant 1 : index
    %c0_34 = arith.constant 0 : index
    %c0_35 = arith.constant 0 : index
    %231 = vector.load %arg5[%c1, %c0_34, %c0_35] : memref<2x8x2xf32, #tpu.memory_space<vmem>>, vector<1x8x2xf32>
    %232 = vector.shape_cast %231 : vector<1x8x2xf32> to vector<8x2xf32>
    %233 = vector.shape_cast %218 : vector<8x2xf32> to vector<1x8x2xf32>
    tpu.vector_store %arg5[%c1, %c0_34, %c0_35], %233 {strides = array<i32>} : memref<2x8x2xf32, #tpu.memory_space<vmem>>, vector<1x8x2xf32>,
    %c1_36 = arith.constant 1 : index
    %c0_37 = arith.constant 0 : index
    %c0_38 = arith.constant 0 : index
    %234 = vector.load %arg6[%c1_36, %c0_37, %c0_38] : memref<2x8x4xf32, #tpu.memory_space<vmem>>, vector<1x8x4xf32>
    %235 = vector.shape_cast %234 : vector<1x8x4xf32> to vector<8x4xf32>
    %236 = vector.shape_cast %230 : vector<8x4xf32> to vector<1x8x4xf32>
    tpu.vector_store %arg6[%c1_36, %c0_37, %c0_38], %236 {strides = array<i32>} : memref<2x8x4xf32, #tpu.memory_space<vmem>>, vector<1x8x4xf32>,
    return
  }
}

</mosaic_0001>

<llo_original>
// kernel: hit_gaus_forward.1
$region0: #{hit_gaus_forward.1}
  #allocation0 [shape = 'u32[]', space=smem, size = 0x4, offset = 0x4, fixed_abs, tag = 'smem constant byte address 0x4 - core index']
  #allocation1 [shape = 'u32[144,128]{1,0:T(1,128)}', space=vmem, size = 0x12000, scoped, tag = 'internal scratch']
  %s0 = inlined_call_operand.vmem [shape: f32[2,24], index: 0, kind: input, shape index: {}]
  %s1 = inlined_call_operand.vmem [shape: f32[8,20], index: 1, kind: input, shape index: {}]
  %s2 = inlined_call_operand.vmem [shape: f32[1,20], index: 2, kind: input, shape index: {}]
  %s3 = inlined_call_operand.vmem [shape: f32[5,5], index: 3, kind: input, shape index: {}]
  %s4 = inlined_call_operand.vmem [shape: f32[1,5], index: 4, kind: input, shape index: {}]
  %s5 = inlined_call_operand.vmem [shape: f32[2,8,2], index: 5, kind: output, shape index: {0}]
  %s6 = inlined_call_operand.vmem [shape: f32[2,8,4], index: 6, kind: output, shape index: {1}]
  %7 = xla_tuple %s5, %s6
  %s8 = sld [smem:[#allocation0]]
  $region38: #{hit_gaus_forward.1} parent=0
    _
  %s10 = ssub.s32 1, %s8
  %s11 = scalar_select 0, %s10, %s8
  // Predicated region
  $region2: #{hit_gaus_forward.1} parent=0 // pred_check
    _
  $region3: #{hit_gaus_forward.1} parent=0 // pred_check_branch
    %13 = sbr.rel (0) target = $region5
  $region4: #{hit_gaus_forward.1} parent=0 // pred_region
    _
  $region5: #{hit_gaus_forward.1} parent=0 // pred_fallthru
    _
  // Predicated region
  $region6: #{hit_gaus_forward.1} parent=0 // pred_check
    _
  $region7: #{hit_gaus_forward.1} parent=0 // pred_check_branch
    %15 = sbr.rel (0) target = $region9
  $region8: #{hit_gaus_forward.1} parent=0 // pred_region
    _
  $region9: #{hit_gaus_forward.1} parent=0 // pred_fallthru
    _
  // Predicated region
  $region10: #{hit_gaus_forward.1} parent=0 // pred_check
    _
  $region11: #{hit_gaus_forward.1} parent=0 // pred_check_branch
    %17 = sbr.rel (0) target = $region13
  $region12: #{hit_gaus_forward.1} parent=0 // pred_region
    _
  $region13: #{hit_gaus_forward.1} parent=0 // pred_fallthru
    _
  // Predicated region
  $region14: #{hit_gaus_forward.1} parent=0 // pred_check
    _
  $region15: #{hit_gaus_forward.1} parent=0 // pred_check_branch
    %19 = sbr.rel (0) target = $region17
  $region16: #{hit_gaus_forward.1} parent=0 // pred_region
    _
  $region17: #{hit_gaus_forward.1} parent=0 // pred_fallthru
    _
  // Predicated region
  $region18: #{hit_gaus_forward.1} parent=0 // pred_check
    _
  $region19: #{hit_gaus_forward.1} parent=0 // pred_check_branch
    %21 = sbr.rel (0) target = $region21
  $region20: #{hit_gaus_forward.1} parent=0 // pred_region
    _
  $region21: #{hit_gaus_forward.1} parent=0 // pred_fallthru
    _
  %v22 = vld [vmem:[%s0] sm:$0x3]
  %v23 = vld [vmem:[%s1] sm:$0xff]
  %v24 = vld [vmem:[%s2] sm:$0x1]
  %vm25 = vcmask 23552
  %v26 = vsel %vm25, %v22, 0.0
  %v28 = vlaneseq
  %v29 = vshrl.u32 %v28, 7
  %v30 = vsub.s32 0, %v29
  %v31 = vrot.slane %v24, %v30
  %vm33 = vcmask 64512
  %v35 = vsel %vm33, %v26, 0
  %37 = vmatprep.subr.mxu0 0.0
  %38 = vmatpush1.msra.mxu0 %v23
  %39 = vmatprep.subr.mxu0 0.0
  %40 = vmatpush1.msra.mxu0 0.0
  %41 = vmatprep.subr.mxu0 0.0
  %42 = vmatpush1.msra.mxu0 0.0
  %43 = vmatprep.subr.mxu0 0.0
  %44 = vmatpush1.msra.mxu0 0.0
  %45 = vmatprep.subr.mxu0 0.0
  %46 = vmatpush1.msra.mxu0 0.0
  %47 = vmatprep.subr.mxu0 0.0
  %48 = vmatpush1.msra.mxu0 0.0
  %49 = vmatprep.subr.mxu0 0.0
  %50 = vmatpush1.msra.mxu0 0.0
  %51 = vmatprep.subr.mxu0 0.0
  %52 = vmatpush1.msra.mxu0 0.0
  %53 = vmatprep.subr.mxu0 0.0
  %54 = vmatpush1.msra.mxu0 0.0
  %55 = vmatprep.subr.mxu0 0.0
  %56 = vmatpush1.msra.mxu0 0.0
  %57 = vmatprep.subr.mxu0 0.0
  %58 = vmatpush1.msra.mxu0 0.0
  %59 = vmatprep.subr.mxu0 0.0
  %60 = vmatpush1.msra.mxu0 0.0
  %61 = vmatprep.subr.mxu0 0.0
  %62 = vmatpush1.msra.mxu0 0.0
  %63 = vmatprep.subr.mxu0 0.0
  %64 = vmatpush1.msra.mxu0 0.0
  %65 = vmatprep.subr.mxu0 0.0
  %66 = vmatpush1.msra.mxu0 0.0
  %67 = vmatprep.subr.mxu0 0.0
  %68 = vmatpush1.msra.mxu0 0.0
  %69 = vmatprep.subr.mxu0 0.0
  %70 = vmatpush1.msra.mxu0 0.0
  %71 = vmatprep.subr.mxu0 0.0
  %72 = vmatpush1.msra.mxu0 0.0
  %73 = vmatprep.subr.mxu0 0.0
  %74 = vmatpush1.msra.mxu0 0.0
  %75 = vmatprep.subr.mxu0 0.0
  %76 = vmatpush1.msra.mxu0 0.0
  %77 = vmatprep.subr.mxu0 0.0
  %78 = vmatpush1.msra.mxu0 0.0
  %79 = vmatprep.subr.mxu0 0.0
  %80 = vmatpush1.msra.mxu0 0.0
  %81 = vmatprep.subr.mxu0 0.0
  %82 = vmatpush1.msra.mxu0 0.0
  %83 = vmatprep.subr.mxu0 0.0
  %84 = vmatpush1.msra.mxu0 0.0
  %85 = vmatprep.subr.mxu0 0.0
  %86 = vmatpush1.msra.mxu0 0.0
  %87 = vmatprep.subr.mxu0 0.0
  %88 = vmatpush1.msra.mxu0 0.0
  %89 = vmatprep.subr.mxu0 0.0
  %90 = vmatpush1.msra.mxu0 0.0
  %91 = vmatprep.subr.mxu0 0.0
  %92 = vmatpush1.msra.mxu0 0.0
  %93 = vmatprep.subr.mxu0 0.0
  %94 = vmatpush1.msra.mxu0 0.0
  %95 = vmatprep.subr.mxu0 0.0
  %96 = vmatpush1.msra.mxu0 0.0
  %97 = vmatprep.subr.mxu0 0.0
  %98 = vmatpush1.msra.mxu0 0.0
  %99 = vmatprep.subr.mxu0 0.0
  %100 = vmatpush1.msra.mxu0 0.0
  %101 = vmatprep.mubr.f32.mxu0 0.0
  %102 = vmatmul.mubr.f32.gmra.mrb[0].mxu0 %v35
  %v103 = vpop.f32.mrb[0].mxu0
  %v104 = vadd.f32 %v31, %v103
  %v105 = vpop.f32.mrb[0].mxu0
  %106 = vdwg.mxu0
  %v107 = vxor.u32 %v104, 2147483648
  %v108 = vmul.f32 %v107, 1.442695
  %v109 = vpow.pop %v108
  %v110 = vadd.f32 %v109, 1.0
  %v111 = vrcp.pop %v110
  %v112 = vmul.f32 1.0, %v111
  %v113 = vtanh.pop %v104
  %v114 = vmul.f32 %v112, 0.0
  %116 = vrot.lane.b32.xlu0 %v113, 113
  %v117 = vpop.permute.xlu0 %116
  %v119 = vmul.f32 %v112, %v117
  %121 = vrot.lane.b32.xlu0 %v119, 5
  %v122 = vpop.permute.xlu0 %121
  %v124 = vadd.f32 %v114, %v122
  %v125 = vtanh.pop %v124
  %127 = vrot.lane.b32.xlu0 %v125, 5
  %v128 = vpop.permute.xlu0 %127
  %v130 = vmul.f32 %v112, %v128
  %132 = vrot.lane.b32.xlu0 %v22, 125
  %v133 = vpop.permute.xlu0 %132
  %136 = vrot.lane.b32.xlu0 %v130, 121
  %v137 = vpop.permute.xlu0 %136
  %v139 = vsel %vm25, %v133, %v137
  %v141 = vsel %vm33, %v139, 0
  %143 = vmatprep.subr.mxu0 0.0
  %144 = vmatpush1.msra.mxu0 %v23
  %145 = vmatprep.subr.mxu0 0.0
  %146 = vmatpush1.msra.mxu0 0.0
  %147 = vmatprep.subr.mxu0 0.0
  %148 = vmatpush1.msra.mxu0 0.0
  %149 = vmatprep.subr.mxu0 0.0
  %150 = vmatpush1.msra.mxu0 0.0
  %151 = vmatprep.subr.mxu0 0.0
  %152 = vmatpush1.msra.mxu0 0.0
  %153 = vmatprep.subr.mxu0 0.0
  %154 = vmatpush1.msra.mxu0 0.0
  %155 = vmatprep.subr.mxu0 0.0
  %156 = vmatpush1.msra.mxu0 0.0
  %157 = vmatprep.subr.mxu0 0.0
  %158 = vmatpush1.msra.mxu0 0.0
  %159 = vmatprep.subr.mxu0 0.0
  %160 = vmatpush1.msra.mxu0 0.0
  %161 = vmatprep.subr.mxu0 0.0
  %162 = vmatpush1.msra.mxu0 0.0
  %163 = vmatprep.subr.mxu0 0.0
  %164 = vmatpush1.msra.mxu0 0.0
  %165 = vmatprep.subr.mxu0 0.0
  %166 = vmatpush1.msra.mxu0 0.0
  %167 = vmatprep.subr.mxu0 0.0
  %168 = vmatpush1.msra.mxu0 0.0
  %169 = vmatprep.subr.mxu0 0.0
  %170 = vmatpush1.msra.mxu0 0.0
  %171 = vmatprep.subr.mxu0 0.0
  %172 = vmatpush1.msra.mxu0 0.0
  %173 = vmatprep.subr.mxu0 0.0
  %174 = vmatpush1.msra.mxu0 0.0
  %175 = vmatprep.subr.mxu0 0.0
  %176 = vmatpush1.msra.mxu0 0.0
  %177 = vmatprep.subr.mxu0 0.0
  %178 = vmatpush1.msra.mxu0 0.0
  %179 = vmatprep.subr.mxu0 0.0
  %180 = vmatpush1.msra.mxu0 0.0
  %181 = vmatprep.subr.mxu0 0.0
  %182 = vmatpush1.msra.mxu0 0.0
  %183 = vmatprep.subr.mxu0 0.0
  %184 = vmatpush1.msra.mxu0 0.0
  %185 = vmatprep.subr.mxu0 0.0
  %186 = vmatpush1.msra.mxu0 0.0
  %187 = vmatprep.subr.mxu0 0.0
  %188 = vmatpush1.msra.mxu0 0.0
  %189 = vmatprep.subr.mxu0 0.0
  %190 = vmatpush1.msra.mxu0 0.0
  %191 = vmatprep.subr.mxu0 0.0
  %192 = vmatpush1.msra.mxu0 0.0
  %193 = vmatprep.subr.mxu0 0.0
  %194 = vmatpush1.msra.mxu0 0.0
  %195 = vmatprep.subr.mxu0 0.0
  %196 = vmatpush1.msra.mxu0 0.0
  %197 = vmatprep.subr.mxu0 0.0
  %198 = vmatpush1.msra.mxu0 0.0
  %199 = vmatprep.subr.mxu0 0.0
  %200 = vmatpush1.msra.mxu0 0.0
  %201 = vmatprep.subr.mxu0 0.0
  %202 = vmatpush1.msra.mxu0 0.0
  %203 = vmatprep.subr.mxu0 0.0
  %204 = vmatpush1.msra.mxu0 0.0
  %205 = vmatprep.subr.mxu0 0.0
  %206 = vmatpush1.msra.mxu0 0.0
  %207 = vmatprep.mubr.f32.mxu0 0.0
  %208 = vmatmul.mubr.f32.gmra.mrb[0].mxu0 %v141
  %v209 = vpop.f32.mrb[0].mxu0
  %v210 = vadd.f32 %v31, %v209
  %v211 = vpop.f32.mrb[0].mxu0
  %212 = vdwg.mxu0
  %v213 = vxor.u32 %v210, 2147483648
  %v214 = vmul.f32 %v213, 1.442695
  %v215 = vpow.pop %v214
  %v216 = vadd.f32 %v215, 1.0
  %v217 = vrcp.pop %v216
  %v218 = vmul.f32 1.0, %v217
  %v219 = vtanh.pop %v210
  %v220 = vmul.f32 %v218, %v124
  %222 = vrot.lane.b32.xlu0 %v219, 113
  %v223 = vpop.permute.xlu0 %222
  %v225 = vmul.f32 %v218, %v223
  %227 = vrot.lane.b32.xlu0 %v225, 5
  %v228 = vpop.permute.xlu0 %227
  %v230 = vadd.f32 %v220, %v228
  %v231 = vtanh.pop %v230
  %233 = vrot.lane.b32.xlu0 %v231, 5
  %v234 = vpop.permute.xlu0 %233
  %v236 = vmul.f32 %v218, %v234
  %237 = vrot.lane.b32.xlu0 %v22, 122
  %v238 = vpop.permute.xlu0 %237
  %241 = vrot.lane.b32.xlu0 %v236, 121
  %v242 = vpop.permute.xlu0 %241
  %v244 = vsel %vm25, %v238, %v242
  %v246 = vsel %vm33, %v244, 0
  %248 = vmatprep.subr.mxu0 0.0
  %249 = vmatpush1.msra.mxu0 %v23
  %250 = vmatprep.subr.mxu0 0.0
  %251 = vmatpush1.msra.mxu0 0.0
  %252 = vmatprep.subr.mxu0 0.0
  %253 = vmatpush1.msra.mxu0 0.0
  %254 = vmatprep.subr.mxu0 0.0
  %255 = vmatpush1.msra.mxu0 0.0
  %256 = vmatprep.subr.mxu0 0.0
  %257 = vmatpush1.msra.mxu0 0.0
  %258 = vmatprep.subr.mxu0 0.0
  %259 = vmatpush1.msra.mxu0 0.0
  %260 = vmatprep.subr.mxu0 0.0
  %261 = vmatpush1.msra.mxu0 0.0
  %262 = vmatprep.subr.mxu0 0.0
  %263 = vmatpush1.msra.mxu0 0.0
  %264 = vmatprep.subr.mxu0 0.0
  %265 = vmatpush1.msra.mxu0 0.0
  %266 = vmatprep.subr.mxu0 0.0
  %267 = vmatpush1.msra.mxu0 0.0
  %268 = vmatprep.subr.mxu0 0.0
  %269 = vmatpush1.msra.mxu0 0.0
  %270 = vmatprep.subr.mxu0 0.0
  %271 = vmatpush1.msra.mxu0 0.0
  %272 = vmatprep.subr.mxu0 0.0
  %273 = vmatpush1.msra.mxu0 0.0
  %274 = vmatprep.subr.mxu0 0.0
  %275 = vmatpush1.msra.mxu0 0.0
  %276 = vmatprep.subr.mxu0 0.0
  %277 = vmatpush1.msra.mxu0 0.0
  %278 = vmatprep.subr.mxu0 0.0
  %279 = vmatpush1.msra.mxu0 0.0
  %280 = vmatprep.subr.mxu0 0.0
  %281 = vmatpush1.msra.mxu0 0.0
  %282 = vmatprep.subr.mxu0 0.0
  %283 = vmatpush1.msra.mxu0 0.0
  %284 = vmatprep.subr.mxu0 0.0
  %285 = vmatpush1.msra.mxu0 0.0
  %286 = vmatprep.subr.mxu0 0.0
  %287 = vmatpush1.msra.mxu0 0.0
  %288 = vmatprep.subr.mxu0 0.0
  %289 = vmatpush1.msra.mxu0 0.0
  %290 = vmatprep.subr.mxu0 0.0
  %291 = vmatpush1.msra.mxu0 0.0
  %292 = vmatprep.subr.mxu0 0.0
  %293 = vmatpush1.msra.mxu0 0.0
  %294 = vmatprep.subr.mxu0 0.0
  %295 = vmatpush1.msra.mxu0 0.0
  %296 = vmatprep.subr.mxu0 0.0
  %297 = vmatpush1.msra.mxu0 0.0
  %298 = vmatprep.subr.mxu0 0.0
  %299 = vmatpush1.msra.mxu0 0.0
  %300 = vmatprep.subr.mxu0 0.0
  %301 = vmatpush1.msra.mxu0 0.0
  %302 = vmatprep.subr.mxu0 0.0
  %303 = vmatpush1.msra.mxu0 0.0
  %304 = vmatprep.subr.mxu0 0.0
  %305 = vmatpush1.msra.mxu0 0.0
  %306 = vmatprep.subr.mxu0 0.0
  %307 = vmatpush1.msra.mxu0 0.0
  %308 = vmatprep.subr.mxu0 0.0
  %309 = vmatpush1.msra.mxu0 0.0
  %310 = vmatprep.subr.mxu0 0.0
  %311 = vmatpush1.msra.mxu0 0.0
  %312 = vmatprep.mubr.f32.mxu0 0.0
  %313 = vmatmul.mubr.f32.gmra.mrb[0].mxu0 %v246
  %v314 = vpop.f32.mrb[0].mxu0
  %v315 = vadd.f32 %v31, %v314
  %v316 = vpop.f32.mrb[0].mxu0
  %317 = vdwg.mxu0
  %v318 = vxor.u32 %v315, 2147483648
  %v319 = vmul.f32 %v318, 1.442695
  %v320 = vpow.pop %v319
  %v321 = vadd.f32 %v320, 1.0
  %v322 = vrcp.pop %v321
  %v323 = vmul.f32 1.0, %v322
  %v324 = vtanh.pop %v315
  %v325 = vmul.f32 %v323, %v230
  %327 = vrot.lane.b32.xlu0 %v324, 113
  %v328 = vpop.permute.xlu0 %327
  %v330 = vmul.f32 %v323, %v328
  %332 = vrot.lane.b32.xlu0 %v330, 5
  %v333 = vpop.permute.xlu0 %332
  %v335 = vadd.f32 %v325, %v333
  %v336 = vtanh.pop %v335
  %338 = vrot.lane.b32.xlu0 %v336, 5
  %v339 = vpop.permute.xlu0 %338
  %v341 = vmul.f32 %v323, %v339
  %342 = vrot.lane.b32.xlu0 %v22, 119
  %v343 = vpop.permute.xlu0 %342
  %346 = vrot.lane.b32.xlu0 %v341, 121
  %v347 = vpop.permute.xlu0 %346
  %v349 = vsel %vm25, %v343, %v347
  %v351 = vsel %vm33, %v349, 0
  %353 = vmatprep.subr.mxu0 0.0
  %354 = vmatpush1.msra.mxu0 %v23
  %355 = vmatprep.subr.mxu0 0.0
  %356 = vmatpush1.msra.mxu0 0.0
  %357 = vmatprep.subr.mxu0 0.0
  %358 = vmatpush1.msra.mxu0 0.0
  %359 = vmatprep.subr.mxu0 0.0
  %360 = vmatpush1.msra.mxu0 0.0
  %361 = vmatprep.subr.mxu0 0.0
  %362 = vmatpush1.msra.mxu0 0.0
  %363 = vmatprep.subr.mxu0 0.0
  %364 = vmatpush1.msra.mxu0 0.0
  %365 = vmatprep.subr.mxu0 0.0
  %366 = vmatpush1.msra.mxu0 0.0
  %367 = vmatprep.subr.mxu0 0.0
  %368 = vmatpush1.msra.mxu0 0.0
  %369 = vmatprep.subr.mxu0 0.0
  %370 = vmatpush1.msra.mxu0 0.0
  %371 = vmatprep.subr.mxu0 0.0
  %372 = vmatpush1.msra.mxu0 0.0
  %373 = vmatprep.subr.mxu0 0.0
  %374 = vmatpush1.msra.mxu0 0.0
  %375 = vmatprep.subr.mxu0 0.0
  %376 = vmatpush1.msra.mxu0 0.0
  %377 = vmatprep.subr.mxu0 0.0
  %378 = vmatpush1.msra.mxu0 0.0
  %379 = vmatprep.subr.mxu0 0.0
  %380 = vmatpush1.msra.mxu0 0.0
  %381 = vmatprep.subr.mxu0 0.0
  %382 = vmatpush1.msra.mxu0 0.0
  %383 = vmatprep.subr.mxu0 0.0
  %384 = vmatpush1.msra.mxu0 0.0
  %385 = vmatprep.subr.mxu0 0.0
  %386 = vmatpush1.msra.mxu0 0.0
  %387 = vmatprep.subr.mxu0 0.0
  %388 = vmatpush1.msra.mxu0 0.0
  %389 = vmatprep.subr.mxu0 0.0
  %390 = vmatpush1.msra.mxu0 0.0
  %391 = vmatprep.subr.mxu0 0.0
  %392 = vmatpush1.msra.mxu0 0.0
  %393 = vmatprep.subr.mxu0 0.0
  %394 = vmatpush1.msra.mxu0 0.0
  %395 = vmatprep.subr.mxu0 0.0
  %396 = vmatpush1.msra.mxu0 0.0
  %397 = vmatprep.subr.mxu0 0.0
  %398 = vmatpush1.msra.mxu0 0.0
  %399 = vmatprep.subr.mxu0 0.0
  %400 = vmatpush1.msra.mxu0 0.0
  %401 = vmatprep.subr.mxu0 0.0
  %402 = vmatpush1.msra.mxu0 0.0
  %403 = vmatprep.subr.mxu0 0.0
  %404 = vmatpush1.msra.mxu0 0.0
  %405 = vmatprep.subr.mxu0 0.0
  %406 = vmatpush1.msra.mxu0 0.0
  %407 = vmatprep.subr.mxu0 0.0
  %408 = vmatpush1.msra.mxu0 0.0
  %409 = vmatprep.subr.mxu0 0.0
  %410 = vmatpush1.msra.mxu0 0.0
  %411 = vmatprep.subr.mxu0 0.0
  %412 = vmatpush1.msra.mxu0 0.0
  %413 = vmatprep.subr.mxu0 0.0
  %414 = vmatpush1.msra.mxu0 0.0
  %415 = vmatprep.subr.mxu0 0.0
  %416 = vmatpush1.msra.mxu0 0.0
  %417 = vmatprep.mubr.f32.mxu0 0.0
  %418 = vmatmul.mubr.f32.gmra.mrb[0].mxu0 %v351
  %v419 = vpop.f32.mrb[0].mxu0
  %v420 = vadd.f32 %v31, %v419
  %v421 = vpop.f32.mrb[0].mxu0
  %422 = vdwg.mxu0
  %v423 = vxor.u32 %v420, 2147483648
  %v424 = vmul.f32 %v423, 1.442695
  %v425 = vpow.pop %v424
  %v426 = vadd.f32 %v425, 1.0
  %v427 = vrcp.pop %v426
  %v428 = vmul.f32 1.0, %v427
  %v429 = vtanh.pop %v420
  %v430 = vmul.f32 %v428, %v335
  %432 = vrot.lane.b32.xlu0 %v429, 113
  %v433 = vpop.permute.xlu0 %432
  %v435 = vmul.f32 %v428, %v433
  %437 = vrot.lane.b32.xlu0 %v435, 5
  %v438 = vpop.permute.xlu0 %437
  %v440 = vadd.f32 %v430, %v438
  %v441 = vtanh.pop %v440
  %443 = vrot.lane.b32.xlu0 %v441, 5
  %v444 = vpop.permute.xlu0 %443
  %v446 = vmul.f32 %v428, %v444
  %447 = vrot.lane.b32.xlu0 %v22, 116
  %v448 = vpop.permute.xlu0 %447
  %451 = vrot.lane.b32.xlu0 %v446, 121
  %v452 = vpop.permute.xlu0 %451
  %v454 = vsel %vm25, %v448, %v452
  %v456 = vsel %vm33, %v454, 0
  %458 = vmatprep.subr.mxu0 0.0
  %459 = vmatpush1.msra.mxu0 %v23
  %460 = vmatprep.subr.mxu0 0.0
  %461 = vmatpush1.msra.mxu0 0.0
  %462 = vmatprep.subr.mxu0 0.0
  %463 = vmatpush1.msra.mxu0 0.0
  %464 = vmatprep.subr.mxu0 0.0
  %465 = vmatpush1.msra.mxu0 0.0
  %466 = vmatprep.subr.mxu0 0.0
  %467 = vmatpush1.msra.mxu0 0.0
  %468 = vmatprep.subr.mxu0 0.0
  %469 = vmatpush1.msra.mxu0 0.0
  %470 = vmatprep.subr.mxu0 0.0
  %471 = vmatpush1.msra.mxu0 0.0
  %472 = vmatprep.subr.mxu0 0.0
  %473 = vmatpush1.msra.mxu0 0.0
  %474 = vmatprep.subr.mxu0 0.0
  %475 = vmatpush1.msra.mxu0 0.0
  %476 = vmatprep.subr.mxu0 0.0
  %477 = vmatpush1.msra.mxu0 0.0
  %478 = vmatprep.subr.mxu0 0.0
  %479 = vmatpush1.msra.mxu0 0.0
  %480 = vmatprep.subr.mxu0 0.0
  %481 = vmatpush1.msra.mxu0 0.0
  %482 = vmatprep.subr.mxu0 0.0
  %483 = vmatpush1.msra.mxu0 0.0
  %484 = vmatprep.subr.mxu0 0.0
  %485 = vmatpush1.msra.mxu0 0.0
  %486 = vmatprep.subr.mxu0 0.0
  %487 = vmatpush1.msra.mxu0 0.0
  %488 = vmatprep.subr.mxu0 0.0
  %489 = vmatpush1.msra.mxu0 0.0
  %490 = vmatprep.subr.mxu0 0.0
  %491 = vmatpush1.msra.mxu0 0.0
  %492 = vmatprep.subr.mxu0 0.0
  %493 = vmatpush1.msra.mxu0 0.0
  %494 = vmatprep.subr.mxu0 0.0
  %495 = vmatpush1.msra.mxu0 0.0
  %496 = vmatprep.subr.mxu0 0.0
  %497 = vmatpush1.msra.mxu0 0.0
  %498 = vmatprep.subr.mxu0 0.0
  %499 = vmatpush1.msra.mxu0 0.0
  %500 = vmatprep.subr.mxu0 0.0
  %501 = vmatpush1.msra.mxu0 0.0
  %502 = vmatprep.subr.mxu0 0.0
  %503 = vmatpush1.msra.mxu0 0.0
  %504 = vmatprep.subr.mxu0 0.0
  %505 = vmatpush1.msra.mxu0 0.0
  %506 = vmatprep.subr.mxu0 0.0
  %507 = vmatpush1.msra.mxu0 0.0
  %508 = vmatprep.subr.mxu0 0.0
  %509 = vmatpush1.msra.mxu0 0.0
  %510 = vmatprep.subr.mxu0 0.0
  %511 = vmatpush1.msra.mxu0 0.0
  %512 = vmatprep.subr.mxu0 0.0
  %513 = vmatpush1.msra.mxu0 0.0
  %514 = vmatprep.subr.mxu0 0.0
  %515 = vmatpush1.msra.mxu0 0.0
  %516 = vmatprep.subr.mxu0 0.0
  %517 = vmatpush1.msra.mxu0 0.0
  %518 = vmatprep.subr.mxu0 0.0
  %519 = vmatpush1.msra.mxu0 0.0
  %520 = vmatprep.subr.mxu0 0.0
  %521 = vmatpush1.msra.mxu0 0.0
  %522 = vmatprep.mubr.f32.mxu0 0.0
  %523 = vmatmul.mubr.f32.gmra.mrb[0].mxu0 %v456
  %v524 = vpop.f32.mrb[0].mxu0
  %v525 = vadd.f32 %v31, %v524
  %v526 = vpop.f32.mrb[0].mxu0
  %527 = vdwg.mxu0
  %v528 = vxor.u32 %v525, 2147483648
  %v529 = vmul.f32 %v528, 1.442695
  %v530 = vpow.pop %v529
  %v531 = vadd.f32 %v530, 1.0
  %v532 = vrcp.pop %v531
  %v533 = vmul.f32 1.0, %v532
  %v534 = vtanh.pop %v525
  %v535 = vmul.f32 %v533, %v440
  %537 = vrot.lane.b32.xlu0 %v534, 113
  %v538 = vpop.permute.xlu0 %537
  %v540 = vmul.f32 %v533, %v538
  %542 = vrot.lane.b32.xlu0 %v540, 5
  %v543 = vpop.permute.xlu0 %542
  %v545 = vadd.f32 %v535, %v543
  %v546 = vtanh.pop %v545
  %548 = vrot.lane.b32.xlu0 %v546, 5
  %v549 = vpop.permute.xlu0 %548
  %v551 = vmul.f32 %v533, %v549
  %552 = vrot.lane.b32.xlu0 %v22, 113
  %v553 = vpop.permute.xlu0 %552
  %556 = vrot.lane.b32.xlu0 %v551, 121
  %v557 = vpop.permute.xlu0 %556
  %v559 = vsel %vm25, %v553, %v557
  %v561 = vsel %vm33, %v559, 0
  %563 = vmatprep.subr.mxu0 0.0
  %564 = vmatpush1.msra.mxu0 %v23
  %565 = vmatprep.subr.mxu0 0.0
  %566 = vmatpush1.msra.mxu0 0.0
  %567 = vmatprep.subr.mxu0 0.0
  %568 = vmatpush1.msra.mxu0 0.0
  %569 = vmatprep.subr.mxu0 0.0
  %570 = vmatpush1.msra.mxu0 0.0
  %571 = vmatprep.subr.mxu0 0.0
  %572 = vmatpush1.msra.mxu0 0.0
  %573 = vmatprep.subr.mxu0 0.0
  %574 = vmatpush1.msra.mxu0 0.0
  %575 = vmatprep.subr.mxu0 0.0
  %576 = vmatpush1.msra.mxu0 0.0
  %577 = vmatprep.subr.mxu0 0.0
  %578 = vmatpush1.msra.mxu0 0.0
  %579 = vmatprep.subr.mxu0 0.0
  %580 = vmatpush1.msra.mxu0 0.0
  %581 = vmatprep.subr.mxu0 0.0
  %582 = vmatpush1.msra.mxu0 0.0
  %583 = vmatprep.subr.mxu0 0.0
  %584 = vmatpush1.msra.mxu0 0.0
  %585 = vmatprep.subr.mxu0 0.0
  %586 = vmatpush1.msra.mxu0 0.0
  %587 = vmatprep.subr.mxu0 0.0
  %588 = vmatpush1.msra.mxu0 0.0
  %589 = vmatprep.subr.mxu0 0.0
  %590 = vmatpush1.msra.mxu0 0.0
  %591 = vmatprep.subr.mxu0 0.0
  %592 = vmatpush1.msra.mxu0 0.0
  %593 = vmatprep.subr.mxu0 0.0
  %594 = vmatpush1.msra.mxu0 0.0
  %595 = vmatprep.subr.mxu0 0.0
  %596 = vmatpush1.msra.mxu0 0.0
  %597 = vmatprep.subr.mxu0 0.0
  %598 = vmatpush1.msra.mxu0 0.0
  %599 = vmatprep.subr.mxu0 0.0
  %600 = vmatpush1.msra.mxu0 0.0
  %601 = vmatprep.subr.mxu0 0.0
  %602 = vmatpush1.msra.mxu0 0.0
  %603 = vmatprep.subr.mxu0 0.0
  %604 = vmatpush1.msra.mxu0 0.0
  %605 = vmatprep.subr.mxu0 0.0
  %606 = vmatpush1.msra.mxu0 0.0
  %607 = vmatprep.subr.mxu0 0.0
  %608 = vmatpush1.msra.mxu0 0.0
  %609 = vmatprep.subr.mxu0 0.0
  %610 = vmatpush1.msra.mxu0 0.0
  %611 = vmatprep.subr.mxu0 0.0
  %612 = vmatpush1.msra.mxu0 0.0
  %613 = vmatprep.subr.mxu0 0.0
  %614 = vmatpush1.msra.mxu0 0.0
  %615 = vmatprep.subr.mxu0 0.0
  %616 = vmatpush1.msra.mxu0 0.0
  %617 = vmatprep.subr.mxu0 0.0
  %618 = vmatpush1.msra.mxu0 0.0
  %619 = vmatprep.subr.mxu0 0.0
  %620 = vmatpush1.msra.mxu0 0.0
  %621 = vmatprep.subr.mxu0 0.0
  %622 = vmatpush1.msra.mxu0 0.0
  %623 = vmatprep.subr.mxu0 0.0
  %624 = vmatpush1.msra.mxu0 0.0
  %625 = vmatprep.subr.mxu0 0.0
  %626 = vmatpush1.msra.mxu0 0.0
  %627 = vmatprep.mubr.f32.mxu0 0.0
  %628 = vmatmul.mubr.f32.gmra.mrb[0].mxu0 %v561
  %v629 = vpop.f32.mrb[0].mxu0
  %v630 = vadd.f32 %v31, %v629
  %v631 = vpop.f32.mrb[0].mxu0
  %632 = vdwg.mxu0
  %v633 = vxor.u32 %v630, 2147483648
  %v634 = vmul.f32 %v633, 1.442695
  %v635 = vpow.pop %v634
  %v636 = vadd.f32 %v635, 1.0
  %v637 = vrcp.pop %v636
  %v638 = vmul.f32 1.0, %v637
  %v639 = vtanh.pop %v630
  %v640 = vmul.f32 %v638, %v545
  %642 = vrot.lane.b32.xlu0 %v639, 113
  %v643 = vpop.permute.xlu0 %642
  %v645 = vmul.f32 %v638, %v643
  %647 = vrot.lane.b32.xlu0 %v645, 5
  %v648 = vpop.permute.xlu0 %647
  %v650 = vadd.f32 %v640, %v648
  %v651 = vtanh.pop %v650
  %653 = vrot.lane.b32.xlu0 %v651, 5
  %v654 = vpop.permute.xlu0 %653
  %v656 = vmul.f32 %v638, %v654
  %657 = vrot.lane.b32.xlu0 %v22, 110
  %v658 = vpop.permute.xlu0 %657
  %661 = vrot.lane.b32.xlu0 %v656, 121
  %v662 = vpop.permute.xlu0 %661
  %v664 = vsel %vm25, %v658, %v662
  %v666 = vsel %vm33, %v664, 0
  %668 = vmatprep.subr.mxu0 0.0
  %669 = vmatpush1.msra.mxu0 %v23
  %670 = vmatprep.subr.mxu0 0.0
  %671 = vmatpush1.msra.mxu0 0.0
  %672 = vmatprep.subr.mxu0 0.0
  %673 = vmatpush1.msra.mxu0 0.0
  %674 = vmatprep.subr.mxu0 0.0
  %675 = vmatpush1.msra.mxu0 0.0
  %676 = vmatprep.subr.mxu0 0.0
  %677 = vmatpush1.msra.mxu0 0.0
  %678 = vmatprep.subr.mxu0 0.0
  %679 = vmatpush1.msra.mxu0 0.0
  %680 = vmatprep.subr.mxu0 0.0
  %681 = vmatpush1.msra.mxu0 0.0
  %682 = vmatprep.subr.mxu0 0.0
  %683 = vmatpush1.msra.mxu0 0.0
  %684 = vmatprep.subr.mxu0 0.0
  %685 = vmatpush1.msra.mxu0 0.0
  %686 = vmatprep.subr.mxu0 0.0
  %687 = vmatpush1.msra.mxu0 0.0
  %688 = vmatprep.subr.mxu0 0.0
  %689 = vmatpush1.msra.mxu0 0.0
  %690 = vmatprep.subr.mxu0 0.0
  %691 = vmatpush1.msra.mxu0 0.0
  %692 = vmatprep.subr.mxu0 0.0
  %693 = vmatpush1.msra.mxu0 0.0
  %694 = vmatprep.subr.mxu0 0.0
  %695 = vmatpush1.msra.mxu0 0.0
  %696 = vmatprep.subr.mxu0 0.0
  %697 = vmatpush1.msra.mxu0 0.0
  %698 = vmatprep.subr.mxu0 0.0
  %699 = vmatpush1.msra.mxu0 0.0
  %700 = vmatprep.subr.mxu0 0.0
  %701 = vmatpush1.msra.mxu0 0.0
  %702 = vmatprep.subr.mxu0 0.0
  %703 = vmatpush1.msra.mxu0 0.0
  %704 = vmatprep.subr.mxu0 0.0
  %705 = vmatpush1.msra.mxu0 0.0
  %706 = vmatprep.subr.mxu0 0.0
  %707 = vmatpush1.msra.mxu0 0.0
  %708 = vmatprep.subr.mxu0 0.0
  %709 = vmatpush1.msra.mxu0 0.0
  %710 = vmatprep.subr.mxu0 0.0
  %711 = vmatpush1.msra.mxu0 0.0
  %712 = vmatprep.subr.mxu0 0.0
  %713 = vmatpush1.msra.mxu0 0.0
  %714 = vmatprep.subr.mxu0 0.0
  %715 = vmatpush1.msra.mxu0 0.0
  %716 = vmatprep.subr.mxu0 0.0
  %717 = vmatpush1.msra.mxu0 0.0
  %718 = vmatprep.subr.mxu0 0.0
  %719 = vmatpush1.msra.mxu0 0.0
  %720 = vmatprep.subr.mxu0 0.0
  %721 = vmatpush1.msra.mxu0 0.0
  %722 = vmatprep.subr.mxu0 0.0
  %723 = vmatpush1.msra.mxu0 0.0
  %724 = vmatprep.subr.mxu0 0.0
  %725 = vmatpush1.msra.mxu0 0.0
  %726 = vmatprep.subr.mxu0 0.0
  %727 = vmatpush1.msra.mxu0 0.0
  %728 = vmatprep.subr.mxu0 0.0
  %729 = vmatpush1.msra.mxu0 0.0
  %730 = vmatprep.subr.mxu0 0.0
  %731 = vmatpush1.msra.mxu0 0.0
  %732 = vmatprep.mubr.f32.mxu0 0.0
  %733 = vmatmul.mubr.f32.gmra.mrb[0].mxu0 %v666
  %v734 = vpop.f32.mrb[0].mxu0
  %v735 = vadd.f32 %v31, %v734
  %v736 = vpop.f32.mrb[0].mxu0
  %737 = vdwg.mxu0
  %v738 = vxor.u32 %v735, 2147483648
  %v739 = vmul.f32 %v738, 1.442695
  %v740 = vpow.pop %v739
  %v741 = vadd.f32 %v740, 1.0
  %v742 = vrcp.pop %v741
  %v743 = vmul.f32 1.0, %v742
  %v744 = vtanh.pop %v735
  %v745 = vmul.f32 %v743, %v650
  %747 = vrot.lane.b32.xlu0 %v744, 113
  %v748 = vpop.permute.xlu0 %747
  %v750 = vmul.f32 %v743, %v748
  %752 = vrot.lane.b32.xlu0 %v750, 5
  %v753 = vpop.permute.xlu0 %752
  %v755 = vadd.f32 %v745, %v753
  %v756 = vtanh.pop %v755
  %758 = vrot.lane.b32.xlu0 %v756, 5
  %v759 = vpop.permute.xlu0 %758
  %v761 = vmul.f32 %v743, %v759
  %762 = vrot.lane.b32.xlu0 %v22, 107
  %v763 = vpop.permute.xlu0 %762
  %766 = vrot.lane.b32.xlu0 %v761, 121
  %v767 = vpop.permute.xlu0 %766
  %v769 = vsel %vm25, %v763, %v767
  %v771 = vsel %vm33, %v769, 0
  %773 = vmatprep.subr.mxu0 0.0
  %774 = vmatpush1.msra.mxu0 %v23
  %775 = vmatprep.subr.mxu0 0.0
  %776 = vmatpush1.msra.mxu0 0.0
  %777 = vmatprep.subr.mxu0 0.0
  %778 = vmatpush1.msra.mxu0 0.0
  %779 = vmatprep.subr.mxu0 0.0
  %780 = vmatpush1.msra.mxu0 0.0
  %781 = vmatprep.subr.mxu0 0.0
  %782 = vmatpush1.msra.mxu0 0.0
  %783 = vmatprep.subr.mxu0 0.0
  %784 = vmatpush1.msra.mxu0 0.0
  %785 = vmatprep.subr.mxu0 0.0
  %786 = vmatpush1.msra.mxu0 0.0
  %787 = vmatprep.subr.mxu0 0.0
  %788 = vmatpush1.msra.mxu0 0.0
  %789 = vmatprep.subr.mxu0 0.0
  %790 = vmatpush1.msra.mxu0 0.0
  %791 = vmatprep.subr.mxu0 0.0
  %792 = vmatpush1.msra.mxu0 0.0
  %793 = vmatprep.subr.mxu0 0.0
  %794 = vmatpush1.msra.mxu0 0.0
  %795 = vmatprep.subr.mxu0 0.0
  %796 = vmatpush1.msra.mxu0 0.0
  %797 = vmatprep.subr.mxu0 0.0
  %798 = vmatpush1.msra.mxu0 0.0
  %799 = vmatprep.subr.mxu0 0.0
  %800 = vmatpush1.msra.mxu0 0.0
  %801 = vmatprep.subr.mxu0 0.0
  %802 = vmatpush1.msra.mxu0 0.0
  %803 = vmatprep.subr.mxu0 0.0
  %804 = vmatpush1.msra.mxu0 0.0
  %805 = vmatprep.subr.mxu0 0.0
  %806 = vmatpush1.msra.mxu0 0.0
  %807 = vmatprep.subr.mxu0 0.0
  %808 = vmatpush1.msra.mxu0 0.0
  %809 = vmatprep.subr.mxu0 0.0
  %810 = vmatpush1.msra.mxu0 0.0
  %811 = vmatprep.subr.mxu0 0.0
  %812 = vmatpush1.msra.mxu0 0.0
  %813 = vmatprep.subr.mxu0 0.0
  %814 = vmatpush1.msra.mxu0 0.0
  %815 = vmatprep.subr.mxu0 0.0
  %816 = vmatpush1.msra.mxu0 0.0
  %817 = vmatprep.subr.mxu0 0.0
  %818 = vmatpush1.msra.mxu0 0.0
  %819 = vmatprep.subr.mxu0 0.0
  %820 = vmatpush1.msra.mxu0 0.0
  %821 = vmatprep.subr.mxu0 0.0
  %822 = vmatpush1.msra.mxu0 0.0
  %823 = vmatprep.subr.mxu0 0.0
  %824 = vmatpush1.msra.mxu0 0.0
  %825 = vmatprep.subr.mxu0 0.0
  %826 = vmatpush1.msra.mxu0 0.0
  %827 = vmatprep.subr.mxu0 0.0
  %828 = vmatpush1.msra.mxu0 0.0
  %829 = vmatprep.subr.mxu0 0.0
  %830 = vmatpush1.msra.mxu0 0.0
  %831 = vmatprep.subr.mxu0 0.0
  %832 = vmatpush1.msra.mxu0 0.0
  %833 = vmatprep.subr.mxu0 0.0
  %834 = vmatpush1.msra.mxu0 0.0
  %835 = vmatprep.subr.mxu0 0.0
  %836 = vmatpush1.msra.mxu0 0.0
  %837 = vmatprep.mubr.f32.mxu0 0.0
  %838 = vmatmul.mubr.f32.gmra.mrb[0].mxu0 %v771
  %v839 = vpop.f32.mrb[0].mxu0
  %v840 = vadd.f32 %v31, %v839
  %v841 = vpop.f32.mrb[0].mxu0
  %842 = vdwg.mxu0
  %v843 = vxor.u32 %v840, 2147483648
  %v844 = vmul.f32 %v843, 1.442695
  %v845 = vpow.pop %v844
  %v846 = vadd.f32 %v845, 1.0
  %v847 = vrcp.pop %v846
  %v848 = vmul.f32 1.0, %v847
  %v849 = vtanh.pop %v840
  %v850 = vmul.f32 %v848, %v755
  %852 = vrot.lane.b32.xlu0 %v849, 113
  %v853 = vpop.permute.xlu0 %852
  %v855 = vmul.f32 %v848, %v853
  %857 = vrot.lane.b32.xlu0 %v855, 5
  %v858 = vpop.permute.xlu0 %857
  %v860 = vadd.f32 %v850, %v858
  %v861 = vtanh.pop %v860
  %863 = vrot.lane.b32.xlu0 %v861, 5
  %v864 = vpop.permute.xlu0 %863
  %v866 = vmul.f32 %v848, %v864
  %v867 = vld [vmem:[%s3] sm:$0x1f]
  %v868 = vld [vmem:[%s4] sm:$0x1]
  %v869 = vrot.slane %v236, 7
  %v871 = vrot.slane %v341, 6
  %v873 = vrot.slane %v446, 5
  %v875 = vrot.slane %v551, 4
  %v877 = vrot.slane %v656, 3
  %v879 = vrot.slane %v761, 2
  %v882 = vrot.slane %v866, 1
  %vm884 = vcmask 1040384
  %v885 = vsel %vm884, %v130, %v869
  %vm886 = vcmask 1041408
  %v887 = vsel %vm886, %v885, %v871
  %vm888 = vcmask 1042432
  %v889 = vsel %vm888, %v887, %v873
  %vm890 = vcmask 1043456
  %v891 = vsel %vm890, %v889, %v875
  %vm892 = vcmask 1044480
  %v893 = vsel %vm892, %v891, %v877
  %vm894 = vcmask 1045504
  %v895 = vsel %vm894, %v893, %v879
  %vm896 = vcmask 1046528
  %v897 = vsel %vm896, %v895, %v882
  %v899 = vlaneseq
  %v900 = vshrl.u32 %v899, 7
  %v901 = vsub.s32 0, %v900
  %v902 = vrot.slane %v868, %v901
  %905 = vrot.lane.b32.xlu0 %v897, 118
  %v906 = vpop.permute.xlu0 %905
  %vm907 = vcmask 39936
  %v908 = vsel %vm907, %v906, 0
  %v911 = vsel %vm892, %v867, 0
  %913 = vmatprep.subr.mxu0 0.0
  %914 = vmatpush1.msra.mxu0 %v911
  %915 = vmatprep.subr.mxu0 0.0
  %916 = vmatpush1.msra.mxu0 0.0
  %917 = vmatprep.subr.mxu0 0.0
  %918 = vmatpush1.msra.mxu0 0.0
  %919 = vmatprep.subr.mxu0 0.0
  %920 = vmatpush1.msra.mxu0 0.0
  %921 = vmatprep.subr.mxu0 0.0
  %922 = vmatpush1.msra.mxu0 0.0
  %923 = vmatprep.subr.mxu0 0.0
  %924 = vmatpush1.msra.mxu0 0.0
  %925 = vmatprep.subr.mxu0 0.0
  %926 = vmatpush1.msra.mxu0 0.0
  %927 = vmatprep.subr.mxu0 0.0
  %928 = vmatpush1.msra.mxu0 0.0
  %929 = vmatprep.subr.mxu0 0.0
  %930 = vmatpush1.msra.mxu0 0.0
  %931 = vmatprep.subr.mxu0 0.0
  %932 = vmatpush1.msra.mxu0 0.0
  %933 = vmatprep.subr.mxu0 0.0
  %934 = vmatpush1.msra.mxu0 0.0
  %935 = vmatprep.subr.mxu0 0.0
  %936 = vmatpush1.msra.mxu0 0.0
  %937 = vmatprep.subr.mxu0 0.0
  %938 = vmatpush1.msra.mxu0 0.0
  %939 = vmatprep.subr.mxu0 0.0
  %940 = vmatpush1.msra.mxu0 0.0
  %941 = vmatprep.subr.mxu0 0.0
  %942 = vmatpush1.msra.mxu0 0.0
  %943 = vmatprep.subr.mxu0 0.0
  %944 = vmatpush1.msra.mxu0 0.0
  %945 = vmatprep.subr.mxu0 0.0
  %946 = vmatpush1.msra.mxu0 0.0
  %947 = vmatprep.subr.mxu0 0.0
  %948 = vmatpush1.msra.mxu0 0.0
  %949 = vmatprep.subr.mxu0 0.0
  %950 = vmatpush1.msra.mxu0 0.0
  %951 = vmatprep.subr.mxu0 0.0
  %952 = vmatpush1.msra.mxu0 0.0
  %953 = vmatprep.subr.mxu0 0.0
  %954 = vmatpush1.msra.mxu0 0.0
  %955 = vmatprep.subr.mxu0 0.0
  %956 = vmatpush1.msra.mxu0 0.0
  %957 = vmatprep.subr.mxu0 0.0
  %958 = vmatpush1.msra.mxu0 0.0
  %959 = vmatprep.subr.mxu0 0.0
  %960 = vmatpush1.msra.mxu0 0.0
  %961 = vmatprep.subr.mxu0 0.0
  %962 = vmatpush1.msra.mxu0 0.0
  %963 = vmatprep.subr.mxu0 0.0
  %964 = vmatpush1.msra.mxu0 0.0
  %965 = vmatprep.subr.mxu0 0.0
  %966 = vmatpush1.msra.mxu0 0.0
  %967 = vmatprep.subr.mxu0 0.0
  %968 = vmatpush1.msra.mxu0 0.0
  %969 = vmatprep.subr.mxu0 0.0
  %970 = vmatpush1.msra.mxu0 0.0
  %971 = vmatprep.subr.mxu0 0.0
  %972 = vmatpush1.msra.mxu0 0.0
  %973 = vmatprep.subr.mxu0 0.0
  %974 = vmatpush1.msra.mxu0 0.0
  %975 = vmatprep.subr.mxu0 0.0
  %976 = vmatpush1.msra.mxu0 0.0
  %977 = vmatprep.mubr.f32.mxu0 0.0
  %978 = vmatmul.mubr.f32.gmra.mrb[0].mxu0 %v908
  %v979 = vpop.f32.mrb[0].mxu0
  %v980 = vadd.f32 %v902, %v979
  %v981 = vpop.f32.mrb[0].mxu0
  %982 = vdwg.mxu0
  %v983 = vmul.f32 %v980, 1.442695
  %v984 = vpow.pop %v983
  %v985 = vtanh.pop %v980
  %987 = vrot.lane.b32.xlu0 %v984, 127
  %v988 = vpop.permute.xlu0 %987
  %v990 = vmul.f32 %v984, %v988
  %v991 = vrsqrt.pop %v990
  %v992 = vmul.f32 %v990, %v991
  %vm993 = vcmp.eq.f32.partialorder %v990, inf
  %v994 = vsel %vm993, %v990, %v992
  %vm995 = vcmp.eq.f32.partialorder %v990, 0.0
  %v996 = vand.u32 %v990, 2147483648
  %v997 = vsel %vm995, %v996, %v994
  %999 = vrot.lane.b32.xlu0 %v985, 126
  %v1000 = vpop.permute.xlu0 %999
  %v1002 = vmul.f32 %v997, %v1000
  %1003 = vrot.lane.b32.xlu0 %v984, 126
  %v1004 = vpop.permute.xlu0 %1003
  %1007 = vrot.lane.b32.xlu0 %v1002, 127
  %v1008 = vpop.permute.xlu0 %1007
  %vm1010 = vcmask 7168
  %v1011 = vsel %vm1010, %v1004, %v1008
  %vm1012 = vcmask 15360
  %v1013 = vsel %vm1012, %v1011, %v1002
  %v1014 = vsel %vm25, %v1013, %v984
  %1015 = vst.msk [vmem:[%s5] sm:$0xff] %vm1012, %v980
  %vm1016 = vcmask 31744
  %1017 = vst.msk [vmem:[%s6] sm:$0xff] %vm1016, %v1014
  %v1018 = vrot.slane %v130, 1
  %v1020 = vrot.slane %v341, 7
  %v1022 = vrot.slane %v446, 6
  %v1024 = vrot.slane %v551, 5
  %v1026 = vrot.slane %v656, 4
  %v1028 = vrot.slane %v761, 3
  %v1030 = vrot.slane %v866, 2
  %v1032 = vsel %vm884, %v1018, %v236
  %v1033 = vsel %vm886, %v1032, %v1020
  %v1034 = vsel %vm888, %v1033, %v1022
  %v1035 = vsel %vm890, %v1034, %v1024
  %v1036 = vsel %vm892, %v1035, %v1026
  %v1037 = vsel %vm894, %v1036, %v1028
  %v1038 = vsel %vm896, %v1037, %v1030
  %1040 = vrot.lane.b32.xlu0 %v1038, 118
  %v1041 = vpop.permute.xlu0 %1040
  %v1042 = vsel %vm907, %v1041, 0
  %1044 = vmatprep.subr.mxu0 0.0
  %1045 = vmatpush1.msra.mxu0 %v911
  %1046 = vmatprep.subr.mxu0 0.0
  %1047 = vmatpush1.msra.mxu0 0.0
  %1048 = vmatprep.subr.mxu0 0.0
  %1049 = vmatpush1.msra.mxu0 0.0
  %1050 = vmatprep.subr.mxu0 0.0
  %1051 = vmatpush1.msra.mxu0 0.0
  %1052 = vmatprep.subr.mxu0 0.0
  %1053 = vmatpush1.msra.mxu0 0.0
  %1054 = vmatprep.subr.mxu0 0.0
  %1055 = vmatpush1.msra.mxu0 0.0
  %1056 = vmatprep.subr.mxu0 0.0
  %1057 = vmatpush1.msra.mxu0 0.0
  %1058 = vmatprep.subr.mxu0 0.0
  %1059 = vmatpush1.msra.mxu0 0.0
  %1060 = vmatprep.subr.mxu0 0.0
  %1061 = vmatpush1.msra.mxu0 0.0
  %1062 = vmatprep.subr.mxu0 0.0
  %1063 = vmatpush1.msra.mxu0 0.0
  %1064 = vmatprep.subr.mxu0 0.0
  %1065 = vmatpush1.msra.mxu0 0.0
  %1066 = vmatprep.subr.mxu0 0.0
  %1067 = vmatpush1.msra.mxu0 0.0
  %1068 = vmatprep.subr.mxu0 0.0
  %1069 = vmatpush1.msra.mxu0 0.0
  %1070 = vmatprep.subr.mxu0 0.0
  %1071 = vmatpush1.msra.mxu0 0.0
  %1072 = vmatprep.subr.mxu0 0.0
  %1073 = vmatpush1.msra.mxu0 0.0
  %1074 = vmatprep.subr.mxu0 0.0
  %1075 = vmatpush1.msra.mxu0 0.0
  %1076 = vmatprep.subr.mxu0 0.0
  %1077 = vmatpush1.msra.mxu0 0.0
  %1078 = vmatprep.subr.mxu0 0.0
  %1079 = vmatpush1.msra.mxu0 0.0
  %1080 = vmatprep.subr.mxu0 0.0
  %1081 = vmatpush1.msra.mxu0 0.0
  %1082 = vmatprep.subr.mxu0 0.0
  %1083 = vmatpush1.msra.mxu0 0.0
  %1084 = vmatprep.subr.mxu0 0.0
  %1085 = vmatpush1.msra.mxu0 0.0
  %1086 = vmatprep.subr.mxu0 0.0
  %1087 = vmatpush1.msra.mxu0 0.0
  %1088 = vmatprep.subr.mxu0 0.0
  %1089 = vmatpush1.msra.mxu0 0.0
  %1090 = vmatprep.subr.mxu0 0.0
  %1091 = vmatpush1.msra.mxu0 0.0
  %1092 = vmatprep.subr.mxu0 0.0
  %1093 = vmatpush1.msra.mxu0 0.0
  %1094 = vmatprep.subr.mxu0 0.0
  %1095 = vmatpush1.msra.mxu0 0.0
  %1096 = vmatprep.subr.mxu0 0.0
  %1097 = vmatpush1.msra.mxu0 0.0
  %1098 = vmatprep.subr.mxu0 0.0
  %1099 = vmatpush1.msra.mxu0 0.0
  %1100 = vmatprep.subr.mxu0 0.0
  %1101 = vmatpush1.msra.mxu0 0.0
  %1102 = vmatprep.subr.mxu0 0.0
  %1103 = vmatpush1.msra.mxu0 0.0
  %1104 = vmatprep.subr.mxu0 0.0
  %1105 = vmatpush1.msra.mxu0 0.0
  %1106 = vmatprep.subr.mxu0 0.0
  %1107 = vmatpush1.msra.mxu0 0.0
  %1108 = vmatprep.mubr.f32.mxu0 0.0
  %1109 = vmatmul.mubr.f32.gmra.mrb[0].mxu0 %v1042
  %v1110 = vpop.f32.mrb[0].mxu0
  %v1111 = vadd.f32 %v902, %v1110
  %v1112 = vpop.f32.mrb[0].mxu0
  %1113 = vdwg.mxu0
  %v1114 = vmul.f32 %v1111, 1.442695
  %v1115 = vpow.pop %v1114
  %v1116 = vtanh.pop %v1111
  %1118 = vrot.lane.b32.xlu0 %v1115, 127
  %v1119 = vpop.permute.xlu0 %1118
  %v1121 = vmul.f32 %v1115, %v1119
  %v1122 = vrsqrt.pop %v1121
  %v1123 = vmul.f32 %v1121, %v1122
  %vm1124 = vcmp.eq.f32.partialorder %v1121, inf
  %v1125 = vsel %vm1124, %v1121, %v1123
  %vm1126 = vcmp.eq.f32.partialorder %v1121, 0.0
  %v1127 = vand.u32 %v1121, 2147483648
  %v1128 = vsel %vm1126, %v1127, %v1125
  %1130 = vrot.lane.b32.xlu0 %v1116, 126
  %v1131 = vpop.permute.xlu0 %1130
  %v1133 = vmul.f32 %v1128, %v1131
  %1134 = vrot.lane.b32.xlu0 %v1115, 126
  %v1135 = vpop.permute.xlu0 %1134
  %1138 = vrot.lane.b32.xlu0 %v1133, 127
  %v1139 = vpop.permute.xlu0 %1138
  %v1141 = vsel %vm1010, %v1135, %v1139
  %v1142 = vsel %vm1012, %v1141, %v1133
  %v1143 = vsel %vm25, %v1142, %v1115
  %s1144 = scalar_lea.vmem %s5, 8
  %1145 = vst.msk [vmem:[%s1144] sm:$0xff] %vm1012, %v1111
  %s1146 = scalar_lea.vmem %s6, 8
  %1147 = vst.msk [vmem:[%s1146] sm:$0xff] %vm1016, %v1143
  // Predicated region
  $region22: #{hit_gaus_forward.1} parent=0 // pred_check
    _
  $region23: #{hit_gaus_forward.1} parent=0 // pred_check_branch
    %1149 = sbr.rel (0) target = $region25
  $region24: #{hit_gaus_forward.1} parent=0 // pred_region
    _
  $region25: #{hit_gaus_forward.1} parent=0 // pred_fallthru
    _
  // Predicated region
  $region26: #{hit_gaus_forward.1} parent=0 // pred_check
    _
  $region27: #{hit_gaus_forward.1} parent=0 // pred_check_branch
    %1151 = sbr.rel (0) target = $region29
  $region28: #{hit_gaus_forward.1} parent=0 // pred_region
    _
  $region29: #{hit_gaus_forward.1} parent=0 // pred_fallthru
    _
  // Predicated region
  $region30: #{hit_gaus_forward.1} parent=0 // pred_check
    _
  $region31: #{hit_gaus_forward.1} parent=0 // pred_check_branch
    %1153 = sbr.rel (0) target = $region33
  $region32: #{hit_gaus_forward.1} parent=0 // pred_region
    _
  $region33: #{hit_gaus_forward.1} parent=0 // pred_fallthru
    _
  // Predicated region
  $region34: #{hit_gaus_forward.1} parent=0 // pred_check
    _
  $region35: #{hit_gaus_forward.1} parent=0 // pred_check_branch
    %1155 = sbr.rel (0) target = $region37
  $region36: #{hit_gaus_forward.1} parent=0 // pred_region
    _
  $region37: #{hit_gaus_forward.1} parent=0 // pred_fallthru
    _

</llo_original>
